<compile_context>
chip_gen: v7x
topology: tpu7x:2x2x1
jax: 0.10.0
libtpu: 0.0.40
codegen_flags: <defaults>
</compile_context>

<pallas_src>
import math

import jax
import jax.numpy as jnp
from jax.experimental import pallas as pl
from jax.experimental.pallas import tpu as pltpu

# ---------------- small, deterministic config ----------------
VOCAB = 64
SEQ = 8
BATCH = 2
HIDDEN = 64
N_HEADS = 2
HEAD_DIM = HIDDEN // N_HEADS
FFN = 128
N_LAYERS = 2
N_CLASS = 4          # MODEL_CONFIGS.N_CLASS
HEAD_H1 = 256
HEAD_H2 = 32
EPS = 1e-5
ATT_SCALE = 1.0 / math.sqrt(HEAD_DIM)

M = BATCH * SEQ                 # rows processed in one block
SLAB_COLS = 256                 # lane width of both packed slabs
OUT_COLS = 128                  # lane-dense padded output width

# ---- bf16 weight-slab row offsets (all multiples of 16 = bf16 sublane tile) --
R_EMB = 0                                   # (VOCAB, HIDDEN)
R_WQKV = R_EMB + VOCAB                      # per layer (HIDDEN, 3*HIDDEN)
R_WO = R_WQKV + N_LAYERS * HIDDEN           # per layer (HIDDEN, HIDDEN)
R_WI = R_WO + N_LAYERS * HIDDEN             # per layer (HIDDEN, FFN)
R_WF = R_WI + N_LAYERS * HIDDEN             # per layer (FFN, HIDDEN)
R_W1 = R_WF + N_LAYERS * FFN                # (HIDDEN, HEAD_H1)
R_W2 = R_W1 + HIDDEN                        # (HEAD_H1, HEAD_H2)
R_W3 = R_W2 + HEAD_H1                       # (HEAD_H2, N_CLASS) zero-padded
W_ROWS = R_W3 + HEAD_H2                     # = 1056

# ---- f32 bias / LN / pos-emb slab row offsets ----
FR_POS = 0                                  # (M, HIDDEN) tiled positional emb
FR_EMB_G = FR_POS + M
FR_EMB_B = FR_EMB_G + 1
FR_LAYER = FR_EMB_B + 1                     # 8 rows per layer:
PER_LAYER_ROWS = 8                          # bqkv, bo, ln1_g, ln1_b, bi, bf, ln2_g, ln2_b
FR_B1 = FR_LAYER + N_LAYERS * PER_LAYER_ROWS
FR_B2 = FR_B1 + 1
FR_B3 = FR_B2 + 1
F_ROWS = ((FR_B3 + 1 + 7) // 8) * 8         # pad to a sublane multiple


def _layernorm(h, g, b):
    mean = jnp.mean(h, axis=-1, keepdims=True)
    var = jnp.mean((h - mean) ** 2, axis=-1, keepdims=True)
    return (h - mean) * jax.lax.rsqrt(var + EPS) * g + b


def _mm(a, b):
    """bf16 x bf16 matmul, f32 accumulation, contracting (a:-1, b:0)."""
    return jnp.dot(a.astype(jnp.bfloat16), b.astype(jnp.bfloat16),
                   preferred_element_type=jnp.float32)


def _mm_t(a, b):
    """a @ b.T without materializing the transpose (contract last dims)."""
    return jax.lax.dot_general(a.astype(jnp.bfloat16), b.astype(jnp.bfloat16),
                               (((1,), (1,)), ((), ())),
                               preferred_element_type=jnp.float32)


# ---------------- fused whole-model Pallas kernel ----------------
def _fused_bert_kernel(ids_ref, mask_ref, w_ref, f_ref, o_ref):
    # ----- embeddings: one-hot gather on the MXU (exact for bf16 table) -----
    ids = ids_ref[...]                                              # (M, 1) i32
    col = jax.lax.broadcasted_iota(jnp.int32, (M, VOCAB), 1)
    onehot = (col == ids).astype(jnp.bfloat16)
    x = jnp.dot(onehot, w_ref[R_EMB:R_EMB + VOCAB, 0:HIDDEN],
                preferred_element_type=jnp.float32)                 # (M, H) f32
    x = x + f_ref[FR_POS:FR_POS + M, 0:HIDDEN]
    x = _layernorm(x,
                   f_ref[FR_EMB_G:FR_EMB_G + 1, 0:HIDDEN],
                   f_ref[FR_EMB_B:FR_EMB_B + 1, 0:HIDDEN])

    mask = mask_ref[...]                                            # (M, M) additive

    for l in range(N_LAYERS):                    # static unroll, N_LAYERS = 2
        fl = FR_LAYER + l * PER_LAYER_ROWS

        # fused QKV projection; 1/sqrt(Dh) pre-folded into the Q slice
        qkv = _mm(x, w_ref[R_WQKV + l * HIDDEN:R_WQKV + (l + 1) * HIDDEN,
                           0:3 * HIDDEN]) + f_ref[fl + 0:fl + 1, 0:3 * HIDDEN]

        # ----- flattened 2-D multi-head attention + split-wo accumulation -----
        attn = None
        for h in range(N_HEADS):                 # static unroll, N_HEADS = 2
            q = qkv[:, h * HEAD_DIM:(h + 1) * HEAD_DIM]
            k = qkv[:, HIDDEN + h * HEAD_DIM:HIDDEN + (h + 1) * HEAD_DIM]
            v = qkv[:, 2 * HIDDEN + h * HEAD_DIM:
                       2 * HIDDEN + (h + 1) * HEAD_DIM]
            s = _mm_t(q, k) + mask                                   # (M, M)
            s = s - jnp.max(s, axis=-1, keepdims=True)
            p = jnp.exp(s)
            p = p * pl.reciprocal(jnp.sum(p, axis=-1, keepdims=True), approx=True)
            c = _mm(p, v)                                            # (M, Dh)
            wo_h = w_ref[R_WO + l * HIDDEN + h * HEAD_DIM:
                         R_WO + l * HIDDEN + (h + 1) * HEAD_DIM, 0:HIDDEN]
            proj = _mm(c, wo_h)                                      # (M, H)
            attn = proj if attn is None else attn + proj
        attn = attn + f_ref[fl + 1:fl + 2, 0:HIDDEN]
        x = _layernorm(attn + x,
                       f_ref[fl + 2:fl + 3, 0:HIDDEN],
                       f_ref[fl + 3:fl + 4, 0:HIDDEN])

        # ----- feed-forward (gelu) + add & LayerNorm -----
        ff = _mm(x, w_ref[R_WI + l * HIDDEN:R_WI + (l + 1) * HIDDEN, 0:FFN]) \
            + f_ref[fl + 4:fl + 5, 0:FFN]
        ff = jax.nn.gelu(ff)
        ff = _mm(ff, w_ref[R_WF + l * FFN:R_WF + (l + 1) * FFN, 0:HIDDEN]) \
            + f_ref[fl + 5:fl + 6, 0:HIDDEN]
        x = _layernorm(ff + x,
                       f_ref[fl + 6:fl + 7, 0:HIDDEN],
                       f_ref[fl + 7:fl + 8, 0:HIDDEN])

    # ----- classification head on all rows (CLS rows selected in wrapper) -----
    # dropouts are identity at inference
    h1 = jnp.maximum(_mm(x, w_ref[R_W1:R_W1 + HIDDEN, 0:HEAD_H1])
                     + f_ref[FR_B1:FR_B1 + 1, 0:HEAD_H1], 0.0)
    h2 = jnp.maximum(_mm(h1, w_ref[R_W2:R_W2 + HEAD_H1, 0:HEAD_H2])
                     + f_ref[FR_B2:FR_B2 + 1, 0:HEAD_H2], 0.0)
    # w3 / b3 are zero-padded beyond N_CLASS -> lane-dense 128-wide output
    logits = _mm(h2, w_ref[R_W3:R_W3 + HEAD_H2, 0:OUT_COLS]) \
        + f_ref[FR_B3:FR_B3 + 1, 0:OUT_COLS]
    lane = jax.lax.broadcasted_iota(jnp.int32, (M, OUT_COLS), 1)
    logits = jnp.where(lane < N_CLASS, logits, -jnp.inf)
    z = logits - jnp.max(logits, axis=-1, keepdims=True)
    lse = jnp.log(jnp.sum(jnp.exp(z), axis=-1, keepdims=True))
    o_ref[...] = z - lse


# ---------------- parameter construction & packing (deterministic) ----------
def make_params(key):
    keys = iter(jax.random.split(key, 64))

    def bert_init(shape, std=0.02):
        return jax.random.normal(next(keys), shape, jnp.float32) * std

    def xavier(fan_in, fan_out):
        std = math.sqrt(2.0 / (fan_in + fan_out))
        return jax.random.normal(next(keys), (fan_in, fan_out), jnp.float32) * std

    # fold the attention scale into the Q columns of wqkv / bqkv
    wqkv = bert_init((N_LAYERS, HIDDEN, 3 * HIDDEN))
    wqkv = wqkv.at[:, :, :HIDDEN].multiply(ATT_SCALE)
    bqkv = bert_init((N_LAYERS, 1, 3 * HIDDEN))
    bqkv = bqkv.at[:, :, :HIDDEN].multiply(ATT_SCALE)

    p = {
        "word_emb": bert_init((VOCAB, HIDDEN)).astype(jnp.bfloat16),
        "pos_emb": bert_init((SEQ, HIDDEN)),
        "emb_ln_g": 1.0 + bert_init((1, HIDDEN)),
        "emb_ln_b": bert_init((1, HIDDEN)),
        "wqkv": wqkv.astype(jnp.bfloat16),
        "bqkv": bqkv,
        "wo": bert_init((N_LAYERS, HIDDEN, HIDDEN)).astype(jnp.bfloat16),
        "bo": bert_init((N_LAYERS, 1, HIDDEN)),
        "ln1_g": 1.0 + bert_init((N_LAYERS, 1, HIDDEN)),
        "ln1_b": bert_init((N_LAYERS, 1, HIDDEN)),
        "wi": bert_init((N_LAYERS, HIDDEN, FFN)).astype(jnp.bfloat16),
        "bi": bert_init((N_LAYERS, 1, FFN)),
        "wf": bert_init((N_LAYERS, FFN, HIDDEN)).astype(jnp.bfloat16),
        "bf": bert_init((N_LAYERS, 1, HIDDEN)),
        "ln2_g": 1.0 + bert_init((N_LAYERS, 1, HIDDEN)),
        "ln2_b": bert_init((N_LAYERS, 1, HIDDEN)),
        # classification head (xavier_normal_ weights)
        "w1": xavier(HIDDEN, HEAD_H1).astype(jnp.bfloat16),
        "b1": bert_init((1, HEAD_H1)),
        "w2": xavier(HEAD_H1, HEAD_H2).astype(jnp.bfloat16),
        "b2": bert_init((1, HEAD_H2)),
        "w3": xavier(HEAD_H2, N_CLASS).astype(jnp.bfloat16),
        "b3": bert_init((1, N_CLASS)),
    }

    def rows(a, dtype):
        a = a.astype(dtype)
        return jnp.pad(a, ((0, 0), (0, SLAB_COLS - a.shape[1])))

    # --- bf16 weight slab ---
    wblocks = [p["word_emb"]]
    wblocks += [p["wqkv"][l] for l in range(N_LAYERS)]
    wblocks += [p["wo"][l] for l in range(N_LAYERS)]
    wblocks += [p["wi"][l] for l in range(N_LAYERS)]
    wblocks += [p["wf"][l] for l in range(N_LAYERS)]
    wblocks += [p["w1"], p["w2"], p["w3"]]
    w_slab = jnp.concatenate([rows(b, jnp.bfloat16) for b in wblocks], axis=0)
    assert w_slab.shape == (W_ROWS, SLAB_COLS)

    # --- f32 bias / LN / pos-emb slab ---
    fblocks = [jnp.tile(p["pos_emb"], (BATCH, 1)), p["emb_ln_g"], p["emb_ln_b"]]
    for l in range(N_LAYERS):
        fblocks += [p["bqkv"][l], p["bo"][l], p["ln1_g"][l], p["ln1_b"][l],
                    p["bi"][l], p["bf"][l], p["ln2_g"][l], p["ln2_b"][l]]
    fblocks += [p["b1"], p["b2"], p["b3"]]
    f_slab = jnp.concatenate([rows(b, jnp.float32) for b in fblocks], axis=0)
    f_slab = jnp.pad(f_slab, ((0, F_ROWS - f_slab.shape[0]), (0, 0)))
    assert f_slab.shape == (F_ROWS, SLAB_COLS)

    p["w_slab"] = w_slab
    p["f_slab"] = f_slab
    return p


# ---------------- forward pass (single pallas_call, 4 input DMAs) ------------
def bert_forward(params, input_ids, attention_mask):
    B, S = input_ids.shape
    assert B == BATCH and S == SEQ
    ids = input_ids.reshape(B * S, 1).astype(jnp.int32)

    # block-diagonal additive mask: key padding within a sequence, -1e9 across
    # different batch elements (so the flattened 2-D attention stays per-seq)
    key_add = ((1.0 - attention_mask.astype(jnp.float32)) * -1e9).reshape(B * S)
    batch_of = jnp.repeat(jnp.arange(B, dtype=jnp.int32), S)
    same = batch_of[:, None] == batch_of[None, :]
    mask = jnp.where(same, key_add[None, :], -1e9).astype(jnp.float32)   # (M, M)

    vmem = pl.BlockSpec(memory_space=pltpu.MemorySpace.VMEM)
    out_pad = pl.pallas_call(
        _fused_bert_kernel,
        out_shape=jax.ShapeDtypeStruct((B * S, OUT_COLS), jnp.float32),
        in_specs=[vmem] * 4,
        out_specs=vmem,
    )(ids, mask, params["w_slab"], params["f_slab"])

    # CLS rows, first N_CLASS lanes
    log_probs = out_pad.reshape(B, S, OUT_COLS)[:, 0, :N_CLASS]
    return log_probs, None


# ---------------- pure-JAX reference (same bf16/f32 recipe) ------------------
def reference_forward(params, input_ids, attention_mask):
    B, S = input_ids.shape
    emb = jnp.take(params["word_emb"], input_ids, axis=0).astype(jnp.float32) \
        + params["pos_emb"][None, :, :]
    x = emb.reshape(B * S, HIDDEN)
    mask = ((1.0 - attention_mask.astype(jnp.float32)) * -1e9)[:, None, :]
    x = _layernorm(x, params["emb_ln_g"], params["emb_ln_b"])
    for l in range(N_LAYERS):
        qkv = jnp.dot(x.astype(jnp.bfloat16), params["wqkv"][l],
                      preferred_element_type=jnp.float32) + params["bqkv"][l]
        ctxs = []
        for h in range(N_HEADS):
            q = qkv[:, h * HEAD_DIM:(h + 1) * HEAD_DIM].reshape(B, S, HEAD_DIM)
            k = qkv[:, HIDDEN + h * HEAD_DIM:
                       HIDDEN + (h + 1) * HEAD_DIM].reshape(B, S, HEAD_DIM)
            v = qkv[:, 2 * HIDDEN + h * HEAD_DIM:
                       2 * HIDDEN + (h + 1) * HEAD_DIM].reshape(B, S, HEAD_DIM)
            # NOTE: 1/sqrt(HEAD_DIM) is folded into wqkv/bqkv Q columns
            s = jnp.einsum('bqd,bkd->bqk',
                           q.astype(jnp.bfloat16), k.astype(jnp.bfloat16),
                           preferred_element_type=jnp.float32) + mask
            s = s - jnp.max(s, axis=-1, keepdims=True)
            p = jnp.exp(s)
            p = p / jnp.sum(p, axis=-1, keepdims=True)
            c = jnp.einsum('bqk,bkd->bqd',
                           p.astype(jnp.bfloat16), v.astype(jnp.bfloat16),
                           preferred_element_type=jnp.float32)
            ctxs.append(c.reshape(B * S, HEAD_DIM))
        ctx = jnp.concatenate(ctxs, axis=-1)
        attn_out = jnp.dot(ctx.astype(jnp.bfloat16), params["wo"][l],
                           preferred_element_type=jnp.float32) + params["bo"][l]
        x = _layernorm(attn_out + x, params["ln1_g"][l], params["ln1_b"][l])
        ff = jax.nn.gelu(jnp.dot(x.astype(jnp.bfloat16), params["wi"][l],
                                 preferred_element_type=jnp.float32) + params["bi"][l])
        ff = jnp.dot(ff.astype(jnp.bfloat16), params["wf"][l],
                     preferred_element_type=jnp.float32) + params["bf"][l]
        x = _layernorm(ff + x, params["ln2_g"][l], params["ln2_b"][l])
    cls = x.reshape(B, S, HIDDEN)[:, 0, :]
    h1 = jnp.maximum(jnp.dot(cls.astype(jnp.bfloat16), params["w1"],
                             preferred_element_type=jnp.float32) + params["b1"], 0.0)
    h2 = jnp.maximum(jnp.dot(h1.astype(jnp.bfloat16), params["w2"],
                             preferred_element_type=jnp.float32) + params["b2"], 0.0)
    logits = jnp.dot(h2.astype(jnp.bfloat16), params["w3"],
                     preferred_element_type=jnp.float32) + params["b3"]
    return jax.nn.log_softmax(logits, axis=-1)


if __name__ == "__main__":
    key = jax.random.PRNGKey(0)
    pkey, ikey = jax.random.split(key)
    params = make_params(pkey)

    tweets_input_ids = jax.random.randint(ikey, (BATCH, SEQ), 0, VOCAB, dtype=jnp.int32)
    tweets_attention_mask = jnp.ones((BATCH, SEQ), jnp.int32).at[1, SEQ - 2:].set(0)

    fwd = jax.jit(bert_forward)
    out, _ = fwd(params, tweets_input_ids, tweets_attention_mask)
    out = jax.block_until_ready(out)

    assert out.shape == (BATCH, N_CLASS)
    # rows of log_softmax output must exp-sum to 1
    assert bool(jnp.allclose(jnp.exp(out).sum(axis=1), 1.0, atol=1e-4))
    # match the pure-JAX reference (same bf16 matmul / f32 accumulation recipe)
    ref = reference_forward(params, tweets_input_ids, tweets_attention_mask)
    assert bool(jnp.allclose(out, ref, atol=2e-2, rtol=2e-2))
    print("KERNEL_OK")
</pallas_src>

<mosaic_0001>
module attributes {stable_mosaic.version = 11 : i64} {
  func.func @_fused_bert_kernel(%arg0: memref<16x1xi32, #tpu.memory_space<vmem>>, %arg1: memref<16x16xf32, #tpu.memory_space<vmem>>, %arg2: memref<1056x256xbf16, #tpu.memory_space<vmem>>, %arg3: memref<40x256xf32, #tpu.memory_space<vmem>>, %arg4: memref<16x128xf32, #tpu.memory_space<vmem>>) attributes {dimension_semantics = [], scalar_prefetch = 0 : i64, scratch_operands = 0 : i64, tpu.core_type = #tpu.core_type<tc>} {
    %c0 = arith.constant 0 : index
    %c0_0 = arith.constant 0 : index
    %0 = vector.load %arg0[%c0, %c0_0] : memref<16x1xi32, #tpu.memory_space<vmem>>, vector<16x1xi32>
    %1 = tpu.iota {dimensions = array<i32: 1>} : vector<16x64xi32>
    %2 = vector.broadcast %0 : vector<16x1xi32> to vector<16x64xi32>
    %3 = arith.cmpi eq, %1, %2 : vector<16x64xi32>
    %4 = arith.extui %3 : vector<16x64xi1> to vector<16x64xi32>
    %5 = arith.sitofp %4 : vector<16x64xi32> to vector<16x64xf32>
    %6 = arith.truncf %5 : vector<16x64xf32> to vector<16x64xbf16>
    %c0_1 = arith.constant 0 : index
    %c0_2 = arith.constant 0 : index
    %7 = vector.load %arg2[%c0_1, %c0_2] : memref<1056x256xbf16, #tpu.memory_space<vmem>>, vector<64x64xbf16>
    %cst = arith.constant dense<0.000000e+00> : vector<16x64xf32>
    %8 = tpu.matmul %6, %7, %cst {dimension_numbers = #tpu.dot_dimension_numbers<[1], [0], [0], [1], [0, 0, 1, 1], [], []>} : vector<16x64xbf16>, vector<64x64xbf16>, vector<16x64xf32> -> vector<16x64xf32>
    %c0_3 = arith.constant 0 : index
    %c0_4 = arith.constant 0 : index
    %9 = vector.load %arg3[%c0_3, %c0_4] : memref<40x256xf32, #tpu.memory_space<vmem>>, vector<16x64xf32>
    %10 = arith.addf %8, %9 : vector<16x64xf32>
    %c16 = arith.constant 16 : index
    %c0_5 = arith.constant 0 : index
    %11 = vector.load %arg3[%c16, %c0_5] : memref<40x256xf32, #tpu.memory_space<vmem>>, vector<1x64xf32>
    %c17 = arith.constant 17 : index
    %c0_6 = arith.constant 0 : index
    %12 = vector.load %arg3[%c17, %c0_6] : memref<40x256xf32, #tpu.memory_space<vmem>>, vector<1x64xf32>
    %cst_7 = arith.constant dense<0.000000e+00> : vector<16xf32>
    %13 = vector.multi_reduction <add>, %10, %cst_7 [1] : vector<16x64xf32> to vector<16xf32>
    %14 = vector.shape_cast %13 : vector<16xf32> to vector<16x1xf32>
    %cst_8 = arith.constant 6.400000e+01 : f32
    %15 = vector.broadcast %cst_8 : f32 to vector<16x1xf32>
    %16 = arith.divf %14, %15 : vector<16x1xf32>
    %17 = vector.broadcast %16 : vector<16x1xf32> to vector<16x64xf32>
    %18 = arith.subf %10, %17 : vector<16x64xf32>
    %19 = arith.mulf %18, %18 : vector<16x64xf32>
    %cst_9 = arith.constant dense<0.000000e+00> : vector<16xf32>
    %20 = vector.multi_reduction <add>, %19, %cst_9 [1] : vector<16x64xf32> to vector<16xf32>
    %21 = vector.shape_cast %20 : vector<16xf32> to vector<16x1xf32>
    %cst_10 = arith.constant 6.400000e+01 : f32
    %22 = vector.broadcast %cst_10 : f32 to vector<16x1xf32>
    %23 = arith.divf %21, %22 : vector<16x1xf32>
    %24 = vector.broadcast %16 : vector<16x1xf32> to vector<16x64xf32>
    %25 = arith.subf %10, %24 : vector<16x64xf32>
    %cst_11 = arith.constant 9.99999974E-6 : f32
    %26 = vector.broadcast %cst_11 : f32 to vector<16x1xf32>
    %27 = arith.addf %23, %26 : vector<16x1xf32>
    %28 = math.rsqrt %27 : vector<16x1xf32>
    %29 = vector.broadcast %28 : vector<16x1xf32> to vector<16x64xf32>
    %30 = arith.mulf %25, %29 : vector<16x64xf32>
    %31 = vector.broadcast %11 : vector<1x64xf32> to vector<16x64xf32>
    %32 = arith.mulf %30, %31 : vector<16x64xf32>
    %33 = vector.broadcast %12 : vector<1x64xf32> to vector<16x64xf32>
    %34 = arith.addf %32, %33 : vector<16x64xf32>
    %c0_12 = arith.constant 0 : index
    %c0_13 = arith.constant 0 : index
    %35 = vector.load %arg1[%c0_12, %c0_13] : memref<16x16xf32, #tpu.memory_space<vmem>>, vector<16x16xf32>
    %c64 = arith.constant 64 : index
    %c0_14 = arith.constant 0 : index
    %36 = vector.load %arg2[%c64, %c0_14] : memref<1056x256xbf16, #tpu.memory_space<vmem>>, vector<64x192xbf16>
    %37 = arith.truncf %34 : vector<16x64xf32> to vector<16x64xbf16>
    %cst_15 = arith.constant dense<0.000000e+00> : vector<16x192xf32>
    %38 = tpu.matmul %37, %36, %cst_15 {dimension_numbers = #tpu.dot_dimension_numbers<[1], [0], [0], [1], [0, 0, 1, 1], [], []>} : vector<16x64xbf16>, vector<64x192xbf16>, vector<16x192xf32> -> vector<16x192xf32>
    %c18 = arith.constant 18 : index
    %c0_16 = arith.constant 0 : index
    %39 = vector.load %arg3[%c18, %c0_16] : memref<40x256xf32, #tpu.memory_space<vmem>>, vector<1x192xf32>
    %40 = vector.broadcast %39 : vector<1x192xf32> to vector<16x192xf32>
    %41 = arith.addf %38, %40 : vector<16x192xf32>
    %42 = vector.extract_strided_slice %41 {offsets = [0, 0], sizes = [16, 32], strides = [1, 1]} : vector<16x192xf32> to vector<16x32xf32>
    %43 = vector.extract_strided_slice %41 {offsets = [0, 64], sizes = [16, 32], strides = [1, 1]} : vector<16x192xf32> to vector<16x32xf32>
    %44 = vector.extract_strided_slice %41 {offsets = [0, 128], sizes = [16, 32], strides = [1, 1]} : vector<16x192xf32> to vector<16x32xf32>
    %45 = arith.truncf %42 : vector<16x32xf32> to vector<16x32xbf16>
    %46 = arith.truncf %43 : vector<16x32xf32> to vector<16x32xbf16>
    %cst_17 = arith.constant dense<0.000000e+00> : vector<16x16xf32>
    %47 = tpu.matmul %45, %46, %cst_17 {dimension_numbers = #tpu.dot_dimension_numbers<[1], [1], [0], [0], [0, 0, 1, 0], [], []>} : vector<16x32xbf16>, vector<16x32xbf16>, vector<16x16xf32> -> vector<16x16xf32>
    %48 = arith.addf %47, %35 : vector<16x16xf32>
    %cst_18 = arith.constant dense<0xFF800000> : vector<16xf32>
    %49 = vector.multi_reduction <maximumf>, %48, %cst_18 [1] : vector<16x16xf32> to vector<16xf32>
    %50 = vector.shape_cast %49 : vector<16xf32> to vector<16x1xf32>
    %51 = vector.broadcast %50 : vector<16x1xf32> to vector<16x16xf32>
    %52 = arith.subf %48, %51 : vector<16x16xf32>
    %53 = math.exp %52 : vector<16x16xf32>
    %cst_19 = arith.constant dense<0.000000e+00> : vector<16xf32>
    %54 = vector.multi_reduction <add>, %53, %cst_19 [1] : vector<16x16xf32> to vector<16xf32>
    %55 = vector.shape_cast %54 : vector<16xf32> to vector<16x1xf32>
    %56 = tpu.reciprocal %55 {approx = true} : vector<16x1xf32> -> vector<16x1xf32>
    %57 = vector.broadcast %56 : vector<16x1xf32> to vector<16x16xf32>
    %58 = arith.mulf %53, %57 : vector<16x16xf32>
    %59 = arith.truncf %58 : vector<16x16xf32> to vector<16x16xbf16>
    %60 = arith.truncf %44 : vector<16x32xf32> to vector<16x32xbf16>
    %cst_20 = arith.constant dense<0.000000e+00> : vector<16x32xf32>
    %61 = tpu.matmul %59, %60, %cst_20 {dimension_numbers = #tpu.dot_dimension_numbers<[1], [0], [0], [1], [0, 0, 1, 1], [], []>} : vector<16x16xbf16>, vector<16x32xbf16>, vector<16x32xf32> -> vector<16x32xf32>
    %c192 = arith.constant 192 : index
    %c0_21 = arith.constant 0 : index
    %62 = vector.load %arg2[%c192, %c0_21] : memref<1056x256xbf16, #tpu.memory_space<vmem>>, vector<32x64xbf16>
    %63 = arith.truncf %61 : vector<16x32xf32> to vector<16x32xbf16>
    %cst_22 = arith.constant dense<0.000000e+00> : vector<16x64xf32>
    %64 = tpu.matmul %63, %62, %cst_22 {dimension_numbers = #tpu.dot_dimension_numbers<[1], [0], [0], [1], [0, 0, 1, 1], [], []>} : vector<16x32xbf16>, vector<32x64xbf16>, vector<16x64xf32> -> vector<16x64xf32>
    %65 = vector.extract_strided_slice %41 {offsets = [0, 32], sizes = [16, 32], strides = [1, 1]} : vector<16x192xf32> to vector<16x32xf32>
    %66 = vector.extract_strided_slice %41 {offsets = [0, 96], sizes = [16, 32], strides = [1, 1]} : vector<16x192xf32> to vector<16x32xf32>
    %67 = vector.extract_strided_slice %41 {offsets = [0, 160], sizes = [16, 32], strides = [1, 1]} : vector<16x192xf32> to vector<16x32xf32>
    %68 = arith.truncf %65 : vector<16x32xf32> to vector<16x32xbf16>
    %69 = arith.truncf %66 : vector<16x32xf32> to vector<16x32xbf16>
    %cst_23 = arith.constant dense<0.000000e+00> : vector<16x16xf32>
    %70 = tpu.matmul %68, %69, %cst_23 {dimension_numbers = #tpu.dot_dimension_numbers<[1], [1], [0], [0], [0, 0, 1, 0], [], []>} : vector<16x32xbf16>, vector<16x32xbf16>, vector<16x16xf32> -> vector<16x16xf32>
    %71 = arith.addf %70, %35 : vector<16x16xf32>
    %cst_24 = arith.constant dense<0xFF800000> : vector<16xf32>
    %72 = vector.multi_reduction <maximumf>, %71, %cst_24 [1] : vector<16x16xf32> to vector<16xf32>
    %73 = vector.shape_cast %72 : vector<16xf32> to vector<16x1xf32>
    %74 = vector.broadcast %73 : vector<16x1xf32> to vector<16x16xf32>
    %75 = arith.subf %71, %74 : vector<16x16xf32>
    %76 = math.exp %75 : vector<16x16xf32>
    %cst_25 = arith.constant dense<0.000000e+00> : vector<16xf32>
    %77 = vector.multi_reduction <add>, %76, %cst_25 [1] : vector<16x16xf32> to vector<16xf32>
    %78 = vector.shape_cast %77 : vector<16xf32> to vector<16x1xf32>
    %79 = tpu.reciprocal %78 {approx = true} : vector<16x1xf32> -> vector<16x1xf32>
    %80 = vector.broadcast %79 : vector<16x1xf32> to vector<16x16xf32>
    %81 = arith.mulf %76, %80 : vector<16x16xf32>
    %82 = arith.truncf %81 : vector<16x16xf32> to vector<16x16xbf16>
    %83 = arith.truncf %67 : vector<16x32xf32> to vector<16x32xbf16>
    %cst_26 = arith.constant dense<0.000000e+00> : vector<16x32xf32>
    %84 = tpu.matmul %82, %83, %cst_26 {dimension_numbers = #tpu.dot_dimension_numbers<[1], [0], [0], [1], [0, 0, 1, 1], [], []>} : vector<16x16xbf16>, vector<16x32xbf16>, vector<16x32xf32> -> vector<16x32xf32>
    %c224 = arith.constant 224 : index
    %c0_27 = arith.constant 0 : index
    %85 = vector.load %arg2[%c224, %c0_27] : memref<1056x256xbf16, #tpu.memory_space<vmem>>, vector<32x64xbf16>
    %86 = arith.truncf %84 : vector<16x32xf32> to vector<16x32xbf16>
    %cst_28 = arith.constant dense<0.000000e+00> : vector<16x64xf32>
    %87 = tpu.matmul %86, %85, %cst_28 {dimension_numbers = #tpu.dot_dimension_numbers<[1], [0], [0], [1], [0, 0, 1, 1], [], []>} : vector<16x32xbf16>, vector<32x64xbf16>, vector<16x64xf32> -> vector<16x64xf32>
    %88 = arith.addf %64, %87 : vector<16x64xf32>
    %c19 = arith.constant 19 : index
    %c0_29 = arith.constant 0 : index
    %89 = vector.load %arg3[%c19, %c0_29] : memref<40x256xf32, #tpu.memory_space<vmem>>, vector<1x64xf32>
    %90 = vector.broadcast %89 : vector<1x64xf32> to vector<16x64xf32>
    %91 = arith.addf %88, %90 : vector<16x64xf32>
    %92 = arith.addf %91, %34 : vector<16x64xf32>
    %c20 = arith.constant 20 : index
    %c0_30 = arith.constant 0 : index
    %93 = vector.load %arg3[%c20, %c0_30] : memref<40x256xf32, #tpu.memory_space<vmem>>, vector<1x64xf32>
    %c21 = arith.constant 21 : index
    %c0_31 = arith.constant 0 : index
    %94 = vector.load %arg3[%c21, %c0_31] : memref<40x256xf32, #tpu.memory_space<vmem>>, vector<1x64xf32>
    %cst_32 = arith.constant dense<0.000000e+00> : vector<16xf32>
    %95 = vector.multi_reduction <add>, %92, %cst_32 [1] : vector<16x64xf32> to vector<16xf32>
    %96 = vector.shape_cast %95 : vector<16xf32> to vector<16x1xf32>
    %cst_33 = arith.constant 6.400000e+01 : f32
    %97 = vector.broadcast %cst_33 : f32 to vector<16x1xf32>
    %98 = arith.divf %96, %97 : vector<16x1xf32>
    %99 = vector.broadcast %98 : vector<16x1xf32> to vector<16x64xf32>
    %100 = arith.subf %92, %99 : vector<16x64xf32>
    %101 = arith.mulf %100, %100 : vector<16x64xf32>
    %cst_34 = arith.constant dense<0.000000e+00> : vector<16xf32>
    %102 = vector.multi_reduction <add>, %101, %cst_34 [1] : vector<16x64xf32> to vector<16xf32>
    %103 = vector.shape_cast %102 : vector<16xf32> to vector<16x1xf32>
    %cst_35 = arith.constant 6.400000e+01 : f32
    %104 = vector.broadcast %cst_35 : f32 to vector<16x1xf32>
    %105 = arith.divf %103, %104 : vector<16x1xf32>
    %106 = vector.broadcast %98 : vector<16x1xf32> to vector<16x64xf32>
    %107 = arith.subf %92, %106 : vector<16x64xf32>
    %cst_36 = arith.constant 9.99999974E-6 : f32
    %108 = vector.broadcast %cst_36 : f32 to vector<16x1xf32>
    %109 = arith.addf %105, %108 : vector<16x1xf32>
    %110 = math.rsqrt %109 : vector<16x1xf32>
    %111 = vector.broadcast %110 : vector<16x1xf32> to vector<16x64xf32>
    %112 = arith.mulf %107, %111 : vector<16x64xf32>
    %113 = vector.broadcast %93 : vector<1x64xf32> to vector<16x64xf32>
    %114 = arith.mulf %112, %113 : vector<16x64xf32>
    %115 = vector.broadcast %94 : vector<1x64xf32> to vector<16x64xf32>
    %116 = arith.addf %114, %115 : vector<16x64xf32>
    %c320 = arith.constant 320 : index
    %c0_37 = arith.constant 0 : index
    %117 = vector.load %arg2[%c320, %c0_37] : memref<1056x256xbf16, #tpu.memory_space<vmem>>, vector<64x128xbf16>
    %118 = arith.truncf %116 : vector<16x64xf32> to vector<16x64xbf16>
    %cst_38 = arith.constant dense<0.000000e+00> : vector<16x128xf32>
    %119 = tpu.matmul %118, %117, %cst_38 {dimension_numbers = #tpu.dot_dimension_numbers<[1], [0], [0], [1], [0, 0, 1, 1], [], []>} : vector<16x64xbf16>, vector<64x128xbf16>, vector<16x128xf32> -> vector<16x128xf32>
    %c22 = arith.constant 22 : index
    %c0_39 = arith.constant 0 : index
    %120 = vector.load %arg3[%c22, %c0_39] : memref<40x256xf32, #tpu.memory_space<vmem>>, vector<1x128xf32>
    %121 = vector.broadcast %120 : vector<1x128xf32> to vector<16x128xf32>
    %122 = arith.addf %119, %121 : vector<16x128xf32>
    %123 = arith.mulf %122, %122 : vector<16x128xf32>
    %124 = arith.mulf %122, %123 : vector<16x128xf32>
    %cst_40 = arith.constant 4.471500e-02 : f32
    %125 = vector.broadcast %cst_40 : f32 to vector<16x128xf32>
    %126 = arith.mulf %125, %124 : vector<16x128xf32>
    %127 = arith.addf %122, %126 : vector<16x128xf32>
    %cst_41 = arith.constant 0.797884583 : f32
    %128 = vector.broadcast %cst_41 : f32 to vector<16x128xf32>
    %129 = arith.mulf %128, %127 : vector<16x128xf32>
    %130 = math.tanh %129 : vector<16x128xf32>
    %cst_42 = arith.constant 1.000000e+00 : f32
    %131 = vector.broadcast %cst_42 : f32 to vector<16x128xf32>
    %132 = arith.addf %131, %130 : vector<16x128xf32>
    %cst_43 = arith.constant 5.000000e-01 : f32
    %133 = vector.broadcast %cst_43 : f32 to vector<16x128xf32>
    %134 = arith.mulf %133, %132 : vector<16x128xf32>
    %135 = arith.mulf %122, %134 : vector<16x128xf32>
    %c448 = arith.constant 448 : index
    %c0_44 = arith.constant 0 : index
    %136 = vector.load %arg2[%c448, %c0_44] : memref<1056x256xbf16, #tpu.memory_space<vmem>>, vector<128x64xbf16>
    %137 = arith.truncf %135 : vector<16x128xf32> to vector<16x128xbf16>
    %cst_45 = arith.constant dense<0.000000e+00> : vector<16x64xf32>
    %138 = tpu.matmul %137, %136, %cst_45 {dimension_numbers = #tpu.dot_dimension_numbers<[1], [0], [0], [1], [0, 0, 1, 1], [], []>} : vector<16x128xbf16>, vector<128x64xbf16>, vector<16x64xf32> -> vector<16x64xf32>
    %c23 = arith.constant 23 : index
    %c0_46 = arith.constant 0 : index
    %139 = vector.load %arg3[%c23, %c0_46] : memref<40x256xf32, #tpu.memory_space<vmem>>, vector<1x64xf32>
    %140 = vector.broadcast %139 : vector<1x64xf32> to vector<16x64xf32>
    %141 = arith.addf %138, %140 : vector<16x64xf32>
    %142 = arith.addf %141, %116 : vector<16x64xf32>
    %c24 = arith.constant 24 : index
    %c0_47 = arith.constant 0 : index
    %143 = vector.load %arg3[%c24, %c0_47] : memref<40x256xf32, #tpu.memory_space<vmem>>, vector<1x64xf32>
    %c25 = arith.constant 25 : index
    %c0_48 = arith.constant 0 : index
    %144 = vector.load %arg3[%c25, %c0_48] : memref<40x256xf32, #tpu.memory_space<vmem>>, vector<1x64xf32>
    %cst_49 = arith.constant dense<0.000000e+00> : vector<16xf32>
    %145 = vector.multi_reduction <add>, %142, %cst_49 [1] : vector<16x64xf32> to vector<16xf32>
    %146 = vector.shape_cast %145 : vector<16xf32> to vector<16x1xf32>
    %cst_50 = arith.constant 6.400000e+01 : f32
    %147 = vector.broadcast %cst_50 : f32 to vector<16x1xf32>
    %148 = arith.divf %146, %147 : vector<16x1xf32>
    %149 = vector.broadcast %148 : vector<16x1xf32> to vector<16x64xf32>
    %150 = arith.subf %142, %149 : vector<16x64xf32>
    %151 = arith.mulf %150, %150 : vector<16x64xf32>
    %cst_51 = arith.constant dense<0.000000e+00> : vector<16xf32>
    %152 = vector.multi_reduction <add>, %151, %cst_51 [1] : vector<16x64xf32> to vector<16xf32>
    %153 = vector.shape_cast %152 : vector<16xf32> to vector<16x1xf32>
    %cst_52 = arith.constant 6.400000e+01 : f32
    %154 = vector.broadcast %cst_52 : f32 to vector<16x1xf32>
    %155 = arith.divf %153, %154 : vector<16x1xf32>
    %156 = vector.broadcast %148 : vector<16x1xf32> to vector<16x64xf32>
    %157 = arith.subf %142, %156 : vector<16x64xf32>
    %cst_53 = arith.constant 9.99999974E-6 : f32
    %158 = vector.broadcast %cst_53 : f32 to vector<16x1xf32>
    %159 = arith.addf %155, %158 : vector<16x1xf32>
    %160 = math.rsqrt %159 : vector<16x1xf32>
    %161 = vector.broadcast %160 : vector<16x1xf32> to vector<16x64xf32>
    %162 = arith.mulf %157, %161 : vector<16x64xf32>
    %163 = vector.broadcast %143 : vector<1x64xf32> to vector<16x64xf32>
    %164 = arith.mulf %162, %163 : vector<16x64xf32>
    %165 = vector.broadcast %144 : vector<1x64xf32> to vector<16x64xf32>
    %166 = arith.addf %164, %165 : vector<16x64xf32>
    %c128 = arith.constant 128 : index
    %c0_54 = arith.constant 0 : index
    %167 = vector.load %arg2[%c128, %c0_54] : memref<1056x256xbf16, #tpu.memory_space<vmem>>, vector<64x192xbf16>
    %168 = arith.truncf %166 : vector<16x64xf32> to vector<16x64xbf16>
    %cst_55 = arith.constant dense<0.000000e+00> : vector<16x192xf32>
    %169 = tpu.matmul %168, %167, %cst_55 {dimension_numbers = #tpu.dot_dimension_numbers<[1], [0], [0], [1], [0, 0, 1, 1], [], []>} : vector<16x64xbf16>, vector<64x192xbf16>, vector<16x192xf32> -> vector<16x192xf32>
    %c26 = arith.constant 26 : index
    %c0_56 = arith.constant 0 : index
    %170 = vector.load %arg3[%c26, %c0_56] : memref<40x256xf32, #tpu.memory_space<vmem>>, vector<1x192xf32>
    %171 = vector.broadcast %170 : vector<1x192xf32> to vector<16x192xf32>
    %172 = arith.addf %169, %171 : vector<16x192xf32>
    %173 = vector.extract_strided_slice %172 {offsets = [0, 0], sizes = [16, 32], strides = [1, 1]} : vector<16x192xf32> to vector<16x32xf32>
    %174 = vector.extract_strided_slice %172 {offsets = [0, 64], sizes = [16, 32], strides = [1, 1]} : vector<16x192xf32> to vector<16x32xf32>
    %175 = vector.extract_strided_slice %172 {offsets = [0, 128], sizes = [16, 32], strides = [1, 1]} : vector<16x192xf32> to vector<16x32xf32>
    %176 = arith.truncf %173 : vector<16x32xf32> to vector<16x32xbf16>
    %177 = arith.truncf %174 : vector<16x32xf32> to vector<16x32xbf16>
    %cst_57 = arith.constant dense<0.000000e+00> : vector<16x16xf32>
    %178 = tpu.matmul %176, %177, %cst_57 {dimension_numbers = #tpu.dot_dimension_numbers<[1], [1], [0], [0], [0, 0, 1, 0], [], []>} : vector<16x32xbf16>, vector<16x32xbf16>, vector<16x16xf32> -> vector<16x16xf32>
    %179 = arith.addf %178, %35 : vector<16x16xf32>
    %cst_58 = arith.constant dense<0xFF800000> : vector<16xf32>
    %180 = vector.multi_reduction <maximumf>, %179, %cst_58 [1] : vector<16x16xf32> to vector<16xf32>
    %181 = vector.shape_cast %180 : vector<16xf32> to vector<16x1xf32>
    %182 = vector.broadcast %181 : vector<16x1xf32> to vector<16x16xf32>
    %183 = arith.subf %179, %182 : vector<16x16xf32>
    %184 = math.exp %183 : vector<16x16xf32>
    %cst_59 = arith.constant dense<0.000000e+00> : vector<16xf32>
    %185 = vector.multi_reduction <add>, %184, %cst_59 [1] : vector<16x16xf32> to vector<16xf32>
    %186 = vector.shape_cast %185 : vector<16xf32> to vector<16x1xf32>
    %187 = tpu.reciprocal %186 {approx = true} : vector<16x1xf32> -> vector<16x1xf32>
    %188 = vector.broadcast %187 : vector<16x1xf32> to vector<16x16xf32>
    %189 = arith.mulf %184, %188 : vector<16x16xf32>
    %190 = arith.truncf %189 : vector<16x16xf32> to vector<16x16xbf16>
    %191 = arith.truncf %175 : vector<16x32xf32> to vector<16x32xbf16>
    %cst_60 = arith.constant dense<0.000000e+00> : vector<16x32xf32>
    %192 = tpu.matmul %190, %191, %cst_60 {dimension_numbers = #tpu.dot_dimension_numbers<[1], [0], [0], [1], [0, 0, 1, 1], [], []>} : vector<16x16xbf16>, vector<16x32xbf16>, vector<16x32xf32> -> vector<16x32xf32>
    %c256 = arith.constant 256 : index
    %c0_61 = arith.constant 0 : index
    %193 = vector.load %arg2[%c256, %c0_61] : memref<1056x256xbf16, #tpu.memory_space<vmem>>, vector<32x64xbf16>
    %194 = arith.truncf %192 : vector<16x32xf32> to vector<16x32xbf16>
    %cst_62 = arith.constant dense<0.000000e+00> : vector<16x64xf32>
    %195 = tpu.matmul %194, %193, %cst_62 {dimension_numbers = #tpu.dot_dimension_numbers<[1], [0], [0], [1], [0, 0, 1, 1], [], []>} : vector<16x32xbf16>, vector<32x64xbf16>, vector<16x64xf32> -> vector<16x64xf32>
    %196 = vector.extract_strided_slice %172 {offsets = [0, 32], sizes = [16, 32], strides = [1, 1]} : vector<16x192xf32> to vector<16x32xf32>
    %197 = vector.extract_strided_slice %172 {offsets = [0, 96], sizes = [16, 32], strides = [1, 1]} : vector<16x192xf32> to vector<16x32xf32>
    %198 = vector.extract_strided_slice %172 {offsets = [0, 160], sizes = [16, 32], strides = [1, 1]} : vector<16x192xf32> to vector<16x32xf32>
    %199 = arith.truncf %196 : vector<16x32xf32> to vector<16x32xbf16>
    %200 = arith.truncf %197 : vector<16x32xf32> to vector<16x32xbf16>
    %cst_63 = arith.constant dense<0.000000e+00> : vector<16x16xf32>
    %201 = tpu.matmul %199, %200, %cst_63 {dimension_numbers = #tpu.dot_dimension_numbers<[1], [1], [0], [0], [0, 0, 1, 0], [], []>} : vector<16x32xbf16>, vector<16x32xbf16>, vector<16x16xf32> -> vector<16x16xf32>
    %202 = arith.addf %201, %35 : vector<16x16xf32>
    %cst_64 = arith.constant dense<0xFF800000> : vector<16xf32>
    %203 = vector.multi_reduction <maximumf>, %202, %cst_64 [1] : vector<16x16xf32> to vector<16xf32>
    %204 = vector.shape_cast %203 : vector<16xf32> to vector<16x1xf32>
    %205 = vector.broadcast %204 : vector<16x1xf32> to vector<16x16xf32>
    %206 = arith.subf %202, %205 : vector<16x16xf32>
    %207 = math.exp %206 : vector<16x16xf32>
    %cst_65 = arith.constant dense<0.000000e+00> : vector<16xf32>
    %208 = vector.multi_reduction <add>, %207, %cst_65 [1] : vector<16x16xf32> to vector<16xf32>
    %209 = vector.shape_cast %208 : vector<16xf32> to vector<16x1xf32>
    %210 = tpu.reciprocal %209 {approx = true} : vector<16x1xf32> -> vector<16x1xf32>
    %211 = vector.broadcast %210 : vector<16x1xf32> to vector<16x16xf32>
    %212 = arith.mulf %207, %211 : vector<16x16xf32>
    %213 = arith.truncf %212 : vector<16x16xf32> to vector<16x16xbf16>
    %214 = arith.truncf %198 : vector<16x32xf32> to vector<16x32xbf16>
    %cst_66 = arith.constant dense<0.000000e+00> : vector<16x32xf32>
    %215 = tpu.matmul %213, %214, %cst_66 {dimension_numbers = #tpu.dot_dimension_numbers<[1], [0], [0], [1], [0, 0, 1, 1], [], []>} : vector<16x16xbf16>, vector<16x32xbf16>, vector<16x32xf32> -> vector<16x32xf32>
    %c288 = arith.constant 288 : index
    %c0_67 = arith.constant 0 : index
    %216 = vector.load %arg2[%c288, %c0_67] : memref<1056x256xbf16, #tpu.memory_space<vmem>>, vector<32x64xbf16>
    %217 = arith.truncf %215 : vector<16x32xf32> to vector<16x32xbf16>
    %cst_68 = arith.constant dense<0.000000e+00> : vector<16x64xf32>
    %218 = tpu.matmul %217, %216, %cst_68 {dimension_numbers = #tpu.dot_dimension_numbers<[1], [0], [0], [1], [0, 0, 1, 1], [], []>} : vector<16x32xbf16>, vector<32x64xbf16>, vector<16x64xf32> -> vector<16x64xf32>
    %219 = arith.addf %195, %218 : vector<16x64xf32>
    %c27 = arith.constant 27 : index
    %c0_69 = arith.constant 0 : index
    %220 = vector.load %arg3[%c27, %c0_69] : memref<40x256xf32, #tpu.memory_space<vmem>>, vector<1x64xf32>
    %221 = vector.broadcast %220 : vector<1x64xf32> to vector<16x64xf32>
    %222 = arith.addf %219, %221 : vector<16x64xf32>
    %223 = arith.addf %222, %166 : vector<16x64xf32>
    %c28 = arith.constant 28 : index
    %c0_70 = arith.constant 0 : index
    %224 = vector.load %arg3[%c28, %c0_70] : memref<40x256xf32, #tpu.memory_space<vmem>>, vector<1x64xf32>
    %c29 = arith.constant 29 : index
    %c0_71 = arith.constant 0 : index
    %225 = vector.load %arg3[%c29, %c0_71] : memref<40x256xf32, #tpu.memory_space<vmem>>, vector<1x64xf32>
    %cst_72 = arith.constant dense<0.000000e+00> : vector<16xf32>
    %226 = vector.multi_reduction <add>, %223, %cst_72 [1] : vector<16x64xf32> to vector<16xf32>
    %227 = vector.shape_cast %226 : vector<16xf32> to vector<16x1xf32>
    %cst_73 = arith.constant 6.400000e+01 : f32
    %228 = vector.broadcast %cst_73 : f32 to vector<16x1xf32>
    %229 = arith.divf %227, %228 : vector<16x1xf32>
    %230 = vector.broadcast %229 : vector<16x1xf32> to vector<16x64xf32>
    %231 = arith.subf %223, %230 : vector<16x64xf32>
    %232 = arith.mulf %231, %231 : vector<16x64xf32>
    %cst_74 = arith.constant dense<0.000000e+00> : vector<16xf32>
    %233 = vector.multi_reduction <add>, %232, %cst_74 [1] : vector<16x64xf32> to vector<16xf32>
    %234 = vector.shape_cast %233 : vector<16xf32> to vector<16x1xf32>
    %cst_75 = arith.constant 6.400000e+01 : f32
    %235 = vector.broadcast %cst_75 : f32 to vector<16x1xf32>
    %236 = arith.divf %234, %235 : vector<16x1xf32>
    %237 = vector.broadcast %229 : vector<16x1xf32> to vector<16x64xf32>
    %238 = arith.subf %223, %237 : vector<16x64xf32>
    %cst_76 = arith.constant 9.99999974E-6 : f32
    %239 = vector.broadcast %cst_76 : f32 to vector<16x1xf32>
    %240 = arith.addf %236, %239 : vector<16x1xf32>
    %241 = math.rsqrt %240 : vector<16x1xf32>
    %242 = vector.broadcast %241 : vector<16x1xf32> to vector<16x64xf32>
    %243 = arith.mulf %238, %242 : vector<16x64xf32>
    %244 = vector.broadcast %224 : vector<1x64xf32> to vector<16x64xf32>
    %245 = arith.mulf %243, %244 : vector<16x64xf32>
    %246 = vector.broadcast %225 : vector<1x64xf32> to vector<16x64xf32>
    %247 = arith.addf %245, %246 : vector<16x64xf32>
    %c384 = arith.constant 384 : index
    %c0_77 = arith.constant 0 : index
    %248 = vector.load %arg2[%c384, %c0_77] : memref<1056x256xbf16, #tpu.memory_space<vmem>>, vector<64x128xbf16>
    %249 = arith.truncf %247 : vector<16x64xf32> to vector<16x64xbf16>
    %cst_78 = arith.constant dense<0.000000e+00> : vector<16x128xf32>
    %250 = tpu.matmul %249, %248, %cst_78 {dimension_numbers = #tpu.dot_dimension_numbers<[1], [0], [0], [1], [0, 0, 1, 1], [], []>} : vector<16x64xbf16>, vector<64x128xbf16>, vector<16x128xf32> -> vector<16x128xf32>
    %c30 = arith.constant 30 : index
    %c0_79 = arith.constant 0 : index
    %251 = vector.load %arg3[%c30, %c0_79] : memref<40x256xf32, #tpu.memory_space<vmem>>, vector<1x128xf32>
    %252 = vector.broadcast %251 : vector<1x128xf32> to vector<16x128xf32>
    %253 = arith.addf %250, %252 : vector<16x128xf32>
    %254 = arith.mulf %253, %253 : vector<16x128xf32>
    %255 = arith.mulf %253, %254 : vector<16x128xf32>
    %cst_80 = arith.constant 4.471500e-02 : f32
    %256 = vector.broadcast %cst_80 : f32 to vector<16x128xf32>
    %257 = arith.mulf %256, %255 : vector<16x128xf32>
    %258 = arith.addf %253, %257 : vector<16x128xf32>
    %cst_81 = arith.constant 0.797884583 : f32
    %259 = vector.broadcast %cst_81 : f32 to vector<16x128xf32>
    %260 = arith.mulf %259, %258 : vector<16x128xf32>
    %261 = math.tanh %260 : vector<16x128xf32>
    %cst_82 = arith.constant 1.000000e+00 : f32
    %262 = vector.broadcast %cst_82 : f32 to vector<16x128xf32>
    %263 = arith.addf %262, %261 : vector<16x128xf32>
    %cst_83 = arith.constant 5.000000e-01 : f32
    %264 = vector.broadcast %cst_83 : f32 to vector<16x128xf32>
    %265 = arith.mulf %264, %263 : vector<16x128xf32>
    %266 = arith.mulf %253, %265 : vector<16x128xf32>
    %c576 = arith.constant 576 : index
    %c0_84 = arith.constant 0 : index
    %267 = vector.load %arg2[%c576, %c0_84] : memref<1056x256xbf16, #tpu.memory_space<vmem>>, vector<128x64xbf16>
    %268 = arith.truncf %266 : vector<16x128xf32> to vector<16x128xbf16>
    %cst_85 = arith.constant dense<0.000000e+00> : vector<16x64xf32>
    %269 = tpu.matmul %268, %267, %cst_85 {dimension_numbers = #tpu.dot_dimension_numbers<[1], [0], [0], [1], [0, 0, 1, 1], [], []>} : vector<16x128xbf16>, vector<128x64xbf16>, vector<16x64xf32> -> vector<16x64xf32>
    %c31 = arith.constant 31 : index
    %c0_86 = arith.constant 0 : index
    %270 = vector.load %arg3[%c31, %c0_86] : memref<40x256xf32, #tpu.memory_space<vmem>>, vector<1x64xf32>
    %271 = vector.broadcast %270 : vector<1x64xf32> to vector<16x64xf32>
    %272 = arith.addf %269, %271 : vector<16x64xf32>
    %273 = arith.addf %272, %247 : vector<16x64xf32>
    %c32 = arith.constant 32 : index
    %c0_87 = arith.constant 0 : index
    %274 = vector.load %arg3[%c32, %c0_87] : memref<40x256xf32, #tpu.memory_space<vmem>>, vector<1x64xf32>
    %c33 = arith.constant 33 : index
    %c0_88 = arith.constant 0 : index
    %275 = vector.load %arg3[%c33, %c0_88] : memref<40x256xf32, #tpu.memory_space<vmem>>, vector<1x64xf32>
    %cst_89 = arith.constant dense<0.000000e+00> : vector<16xf32>
    %276 = vector.multi_reduction <add>, %273, %cst_89 [1] : vector<16x64xf32> to vector<16xf32>
    %277 = vector.shape_cast %276 : vector<16xf32> to vector<16x1xf32>
    %cst_90 = arith.constant 6.400000e+01 : f32
    %278 = vector.broadcast %cst_90 : f32 to vector<16x1xf32>
    %279 = arith.divf %277, %278 : vector<16x1xf32>
    %280 = vector.broadcast %279 : vector<16x1xf32> to vector<16x64xf32>
    %281 = arith.subf %273, %280 : vector<16x64xf32>
    %282 = arith.mulf %281, %281 : vector<16x64xf32>
    %cst_91 = arith.constant dense<0.000000e+00> : vector<16xf32>
    %283 = vector.multi_reduction <add>, %282, %cst_91 [1] : vector<16x64xf32> to vector<16xf32>
    %284 = vector.shape_cast %283 : vector<16xf32> to vector<16x1xf32>
    %cst_92 = arith.constant 6.400000e+01 : f32
    %285 = vector.broadcast %cst_92 : f32 to vector<16x1xf32>
    %286 = arith.divf %284, %285 : vector<16x1xf32>
    %287 = vector.broadcast %279 : vector<16x1xf32> to vector<16x64xf32>
    %288 = arith.subf %273, %287 : vector<16x64xf32>
    %cst_93 = arith.constant 9.99999974E-6 : f32
    %289 = vector.broadcast %cst_93 : f32 to vector<16x1xf32>
    %290 = arith.addf %286, %289 : vector<16x1xf32>
    %291 = math.rsqrt %290 : vector<16x1xf32>
    %292 = vector.broadcast %291 : vector<16x1xf32> to vector<16x64xf32>
    %293 = arith.mulf %288, %292 : vector<16x64xf32>
    %294 = vector.broadcast %274 : vector<1x64xf32> to vector<16x64xf32>
    %295 = arith.mulf %293, %294 : vector<16x64xf32>
    %296 = vector.broadcast %275 : vector<1x64xf32> to vector<16x64xf32>
    %297 = arith.addf %295, %296 : vector<16x64xf32>
    %c704 = arith.constant 704 : index
    %c0_94 = arith.constant 0 : index
    %298 = vector.load %arg2[%c704, %c0_94] : memref<1056x256xbf16, #tpu.memory_space<vmem>>, vector<64x256xbf16>
    %299 = arith.truncf %297 : vector<16x64xf32> to vector<16x64xbf16>
    %cst_95 = arith.constant dense<0.000000e+00> : vector<16x256xf32>
    %300 = tpu.matmul %299, %298, %cst_95 {dimension_numbers = #tpu.dot_dimension_numbers<[1], [0], [0], [1], [0, 0, 1, 1], [], []>} : vector<16x64xbf16>, vector<64x256xbf16>, vector<16x256xf32> -> vector<16x256xf32>
    %c34 = arith.constant 34 : index
    %c0_96 = arith.constant 0 : index
    %301 = vector.load %arg3[%c34, %c0_96] : memref<40x256xf32, #tpu.memory_space<vmem>>, vector<1x256xf32>
    %302 = vector.broadcast %301 : vector<1x256xf32> to vector<16x256xf32>
    %303 = arith.addf %300, %302 : vector<16x256xf32>
    %cst_97 = arith.constant 0.000000e+00 : f32
    %304 = vector.broadcast %cst_97 : f32 to vector<16x256xf32>
    %305 = arith.maximumf %303, %304 : vector<16x256xf32>
    %c768 = arith.constant 768 : index
    %c0_98 = arith.constant 0 : index
    %306 = vector.load %arg2[%c768, %c0_98] : memref<1056x256xbf16, #tpu.memory_space<vmem>>, vector<256x32xbf16>
    %307 = arith.truncf %305 : vector<16x256xf32> to vector<16x256xbf16>
    %cst_99 = arith.constant dense<0.000000e+00> : vector<16x32xf32>
    %308 = tpu.matmul %307, %306, %cst_99 {dimension_numbers = #tpu.dot_dimension_numbers<[1], [0], [0], [1], [0, 0, 1, 1], [], []>} : vector<16x256xbf16>, vector<256x32xbf16>, vector<16x32xf32> -> vector<16x32xf32>
    %c35 = arith.constant 35 : index
    %c0_100 = arith.constant 0 : index
    %309 = vector.load %arg3[%c35, %c0_100] : memref<40x256xf32, #tpu.memory_space<vmem>>, vector<1x32xf32>
    %310 = vector.broadcast %309 : vector<1x32xf32> to vector<16x32xf32>
    %311 = arith.addf %308, %310 : vector<16x32xf32>
    %cst_101 = arith.constant 0.000000e+00 : f32
    %312 = vector.broadcast %cst_101 : f32 to vector<16x32xf32>
    %313 = arith.maximumf %311, %312 : vector<16x32xf32>
    %c1024 = arith.constant 1024 : index
    %c0_102 = arith.constant 0 : index
    %314 = vector.load %arg2[%c1024, %c0_102] : memref<1056x256xbf16, #tpu.memory_space<vmem>>, vector<32x128xbf16>
    %315 = arith.truncf %313 : vector<16x32xf32> to vector<16x32xbf16>
    %cst_103 = arith.constant dense<0.000000e+00> : vector<16x128xf32>
    %316 = tpu.matmul %315, %314, %cst_103 {dimension_numbers = #tpu.dot_dimension_numbers<[1], [0], [0], [1], [0, 0, 1, 1], [], []>} : vector<16x32xbf16>, vector<32x128xbf16>, vector<16x128xf32> -> vector<16x128xf32>
    %c36 = arith.constant 36 : index
    %c0_104 = arith.constant 0 : index
    %317 = vector.load %arg3[%c36, %c0_104] : memref<40x256xf32, #tpu.memory_space<vmem>>, vector<1x128xf32>
    %318 = vector.broadcast %317 : vector<1x128xf32> to vector<16x128xf32>
    %319 = arith.addf %316, %318 : vector<16x128xf32>
    %320 = tpu.iota {dimensions = array<i32: 1>} : vector<16x128xi32>
    %c4_i32 = arith.constant 4 : i32
    %321 = vector.broadcast %c4_i32 : i32 to vector<16x128xi32>
    %322 = arith.cmpi slt, %320, %321 : vector<16x128xi32>
    %cst_105 = arith.constant 0xFF800000 : f32
    %323 = vector.broadcast %cst_105 : f32 to vector<16x128xf32>
    %324 = arith.select %322, %319, %323 : vector<16x128xi1>, vector<16x128xf32>
    %cst_106 = arith.constant dense<0xFF800000> : vector<16xf32>
    %325 = vector.multi_reduction <maximumf>, %324, %cst_106 [1] : vector<16x128xf32> to vector<16xf32>
    %326 = vector.shape_cast %325 : vector<16xf32> to vector<16x1xf32>
    %327 = vector.broadcast %326 : vector<16x1xf32> to vector<16x128xf32>
    %328 = arith.subf %324, %327 : vector<16x128xf32>
    %329 = math.exp %328 : vector<16x128xf32>
    %cst_107 = arith.constant dense<0.000000e+00> : vector<16xf32>
    %330 = vector.multi_reduction <add>, %329, %cst_107 [1] : vector<16x128xf32> to vector<16xf32>
    %331 = vector.shape_cast %330 : vector<16xf32> to vector<16x1xf32>
    %332 = math.log %331 : vector<16x1xf32>
    %333 = vector.broadcast %332 : vector<16x1xf32> to vector<16x128xf32>
    %334 = arith.subf %328, %333 : vector<16x128xf32>
    %c0_108 = arith.constant 0 : index
    %c0_109 = arith.constant 0 : index
    %335 = vector.load %arg4[%c0_108, %c0_109] : memref<16x128xf32, #tpu.memory_space<vmem>>, vector<16x128xf32>
    tpu.vector_store %arg4[%c0_108, %c0_109], %334 {strides = array<i32>} : memref<16x128xf32, #tpu.memory_space<vmem>>, vector<16x128xf32>,
    return
  }
}

</mosaic_0001>

<llo_original>
// kernel: eq.8
$region0: #{eq.8}
  %s0 = inlined_call_operand.vmem [shape: s32[2,8], index: 0, kind: input, shape index: {}]
  %s1 = inlined_call_operand.vmem [shape: s32[16], index: 1, kind: output, shape index: {}]
  $region1: #{eq.8} parent=0
    #allocation0 [shape = 'u8[4096]{0}', space=vmem, size = 0x1000, scoped, tag = 'scoped mem for output reshape']
    #allocation1 [shape = 'u8[4096]{0}', space=vmem, size = 0x1000, scoped, tag = 'scoped mem for input reshape']
    %s3 = sshllo.u32 0, 2
    %v4 = vld [vmem:[%s0] sm:%s3]
    %5 = vst [vmem:[#allocation1] sm:%s3] %v4
    %v6 = vld [vmem:[#allocation1] sm:$0x1]
    %vm7 = vcmask 64512
    %8 = vst.msk [vmem:[#allocation0] sm:$0x1] %vm7, %v6
    %s9 = scalar_lea.vmem [#allocation1], 1
    %v10 = vld [vmem:[%s9] sm:$0x1]
    %11 = vrot.lane.b32.xlu0 %v10, 8
    %v12 = vpop.permute.xlu0 %11
    %vm13 = vcmask 130112
    %14 = vst.msk [vmem:[#allocation0] sm:$0x1] %vm13, %v12
    %s16 = sshllo.u32 0, 1
    %v18 = vld [vmem:[#allocation0] sm:%s16]
    %s19 = sshllo.u32 0, 1
    %20 = vst [vmem:[%s1] sm:%s19] %v18

// kernel: bert_forward.1
$region0: #{bert_forward.1}
  #allocation0 [shape = 'u32[]', space=smem, size = 0x4, offset = 0x4, fixed_abs, tag = 'smem constant byte address 0x4 - core index']
  #allocation1 [shape = 'u32[144,128]{1,0:T(1,128)}', space=vmem, size = 0x12000, scoped, tag = 'internal scratch']
  %s0 = inlined_call_operand.vmem [shape: s32[16,1], index: 0, kind: input, shape index: {}]
  %s1 = inlined_call_operand.vmem [shape: f32[16,16], index: 1, kind: input, shape index: {}]
  %s2 = inlined_call_operand.hbm [shape: bf16[1056,256], index: 2, kind: input, shape index: {}]
  %s3 = inlined_call_operand.hbm [shape: f32[40,256], index: 3, kind: input, shape index: {}]
  %s4 = inlined_call_operand.vmem [shape: f32[16,128], index: 4, kind: output, shape index: {}]
  %s5 = sld [smem:[#allocation0]]
  $region34: #{bert_forward.1} parent=0
    _
  %s7 = ssub.s32 1, %s5
  %s8 = scalar_select 0, %s7, %s5
  $region1: #{bert_forward.1} parent=0
    #allocation2 [shape = 'u8[540672]{0}', space=vmem, size = 0x84000, scoped, tag = 'input window, operand 2, single buffered']
    #allocation3 [shape = 's32[1]{0}', space=sflag, size = 0x4, scoped, tag = 'scoped memory for bert_forward.1']
    #allocation4 [shape = 'u8[40960]{0}', space=vmem, size = 0xa000, scoped, tag = 'input window, operand 3, single buffered']
    #allocation5 [shape = 's32[1]{0}', space=sflag, size = 0x4, scoped, tag = 'scoped memory for bert_forward.1']
    %9 = vsyncpa [#allocation3], 0
    %10 = vsyncpa [#allocation5], 0
    // Predicated region
    $region2: #{bert_forward.1} parent=1 // pred_check
      _
    $region3: #{bert_forward.1} parent=1 // pred_check_branch
      %12 = sbr.rel (0) target = $region5
    $region4: #{bert_forward.1} parent=1 // pred_region
      _
    $region5: #{bert_forward.1} parent=1 // pred_fallthru
      _
    // Predicated region
    $region6: #{bert_forward.1} parent=1 // pred_check
      _
    $region7: #{bert_forward.1} parent=1 // pred_check_branch
      %14 = sbr.rel (0) target = $region9
    $region8: #{bert_forward.1} parent=1 // pred_region
      _
    $region9: #{bert_forward.1} parent=1 // pred_fallthru
      _
    // Predicated region
    $region10: #{bert_forward.1} parent=1 // pred_check
      _
    $region11: #{bert_forward.1} parent=1 // pred_check_branch
      %16 = sbr.rel (0) target = $region13
    $region12: #{bert_forward.1} parent=1 // pred_region
      %s18 = ssub.s32 16896, 16896
      %19 = vsyncadd [#allocation3], %s18
      %s20 = sshll.u32 [#allocation2], 4
      %s21 = int_to_ptr.vmem [resolvable:$true] %s20
      %26 = dma.hbm_to_vmem [thread:$0]  %s2, 16896, %s21, [#allocation3], 128, 128, 8
    $region13: #{bert_forward.1} parent=1 // pred_fallthru
      _
    // Predicated region
    $region14: #{bert_forward.1} parent=1 // pred_check
      _
    $region15: #{bert_forward.1} parent=1 // pred_check_branch
      %28 = sbr.rel (0) target = $region17
    $region16: #{bert_forward.1} parent=1 // pred_region
      %s30 = ssub.s32 1280, 1280
      %31 = vsyncadd [#allocation5], %s30
      %s32 = sshll.u32 [#allocation4], 4
      %s33 = int_to_ptr.vmem [resolvable:$true] %s32
      %38 = dma.hbm_to_vmem [thread:$0]  %s3, 1280, %s33, [#allocation5], 256, 256, 16
    $region17: #{bert_forward.1} parent=1 // pred_fallthru
      _
    // Predicated region
    $region18: #{bert_forward.1} parent=1 // pred_check
      _
    $region19: #{bert_forward.1} parent=1 // pred_check_branch
      %40 = sbr.rel (0) target = $region21
    $region20: #{bert_forward.1} parent=1 // pred_region
      %41 = dma.done [#allocation3], 16896
    $region21: #{bert_forward.1} parent=1 // pred_fallthru
      _
    // Predicated region
    $region22: #{bert_forward.1} parent=1 // pred_check
      _
    $region23: #{bert_forward.1} parent=1 // pred_check_branch
      %43 = sbr.rel (0) target = $region25
    $region24: #{bert_forward.1} parent=1 // pred_region
      %44 = dma.done [#allocation5], 1280
    $region25: #{bert_forward.1} parent=1 // pred_fallthru
      _
    %v46 = vld [vmem:[%s0] sm:$0xff]
    %v47 = vld [vmem:[%s0 + $0x8] sm:$0xff]
    %v48 = vlaneseq
    %v49 = vand.u32 %v48, 127
    %50 = vset.pattern.permute.xlu0 0
    %51 = vperm.xlu0 %50, %v46
    %v52 = vpop.permute.xlu0 %51
    %53 = vset.pattern.permute.xlu0 0
    %54 = vperm.xlu0 %53, %v47
    %v55 = vpop.permute.xlu0 %54
    %vm56 = vcmp.eq.s32.totalorder %v49, %v52
    %vm57 = vcmp.eq.s32.totalorder %v49, %v55
    %v58 = vsel %vm56, 1, 0
    %v59 = vsel %vm57, 1, 0
    %v60 = vcvt.s32.f32 %v58
    %v61 = vcvt.s32.f32 %v59
    %v62 = vpack.c.bf16 %v61, %v60
    %v63 = vld [vmem:[#allocation2] sm:$0xf]
    %v64 = vld [vmem:[#allocation2 + $0x8] sm:$0xf]
    %v65 = vld [vmem:[#allocation2 + $0x10] sm:$0xf]
    %v66 = vld [vmem:[#allocation2 + $0x18] sm:$0xf]
    %v67 = vld [vmem:[#allocation2 + $0x20] sm:$0xf]
    %v68 = vld [vmem:[#allocation2 + $0x28] sm:$0xf]
    %v69 = vld [vmem:[#allocation2 + $0x30] sm:$0xf]
    %v70 = vld [vmem:[#allocation2 + $0x38] sm:$0xf]
    %v71 = vld [vmem:[#allocation4] sm:$0xff]
    %v72 = vld [vmem:[#allocation4 + $0x10] sm:$0xff]
    %v81 = vunpack.c.l.b16 %v63
    %v82 = vunpack.c.l.b16 %v64
    %v83 = vunpack.c.l.b16 %v65
    %v84 = vunpack.c.l.b16 %v66
    %v85 = vunpack.c.l.b16 %v67
    %v86 = vunpack.c.l.b16 %v68
    %v87 = vunpack.c.l.b16 %v69
    %v88 = vunpack.c.l.b16 %v70
    %v89 = vpack.c.b16 %v82, %v81
    %v90 = vpack.c.b16 %v84, %v83
    %v91 = vpack.c.b16 %v86, %v85
    %v92 = vpack.c.b16 %v88, %v87
    %vm97 = vcmask 523264
    %v99 = vsel %vm97, %v62, 0
    %101 = vmatprep.subr.bf16.mxu0 0
    %102 = vmatpush1.bf16.msra.mxu0 %v89
    %103 = vmatprep.subr.bf16.mxu0 0
    %104 = vmatpush1.bf16.msra.mxu0 %v90
    %105 = vmatprep.subr.bf16.mxu0 0
    %106 = vmatpush1.bf16.msra.mxu0 %v91
    %107 = vmatprep.subr.bf16.mxu0 0
    %108 = vmatpush1.bf16.msra.mxu0 %v92
    %109 = vmatprep.subr.bf16.mxu0 0
    %110 = vmatpush1.bf16.msra.mxu0 0
    %111 = vmatprep.subr.bf16.mxu0 0
    %112 = vmatpush1.bf16.msra.mxu0 0
    %113 = vmatprep.subr.bf16.mxu0 0
    %114 = vmatpush1.bf16.msra.mxu0 0
    %115 = vmatprep.subr.bf16.mxu0 0
    %116 = vmatpush1.bf16.msra.mxu0 0
    %117 = vmatprep.subr.bf16.mxu0 0
    %118 = vmatpush1.bf16.msra.mxu0 0
    %119 = vmatprep.subr.bf16.mxu0 0
    %120 = vmatpush1.bf16.msra.mxu0 0
    %121 = vmatprep.subr.bf16.mxu0 0
    %122 = vmatpush1.bf16.msra.mxu0 0
    %123 = vmatprep.subr.bf16.mxu0 0
    %124 = vmatpush1.bf16.msra.mxu0 0
    %125 = vmatprep.subr.bf16.mxu0 0
    %126 = vmatpush1.bf16.msra.mxu0 0
    %127 = vmatprep.subr.bf16.mxu0 0
    %128 = vmatpush1.bf16.msra.mxu0 0
    %129 = vmatprep.subr.bf16.mxu0 0
    %130 = vmatpush1.bf16.msra.mxu0 0
    %131 = vmatprep.subr.bf16.mxu0 0
    %132 = vmatpush1.bf16.msra.mxu0 0
    %133 = vmatprep.mubr.bf16.mxu0 0
    %134 = vmatmul.mubr.bf16.gmra.mrb[0].mxu0 %v99
    %v135 = vpop.f32.mrb[0].mxu0
    %v136 = vadd.f32 %v71, %v135
    %v137 = vpop.f32.mrb[0].mxu0
    %v138 = vpop.f32.mrb[0].mxu0
    %v139 = vadd.f32 %v72, %v138
    %v140 = vpop.f32.mrb[0].mxu0
    %141 = vdwg.mxu0
    %v142 = vld [vmem:[#allocation4 + $0x20] ss:$0 sm:$0xff]
    %v143 = vld [vmem:[#allocation4 + $0x21] ss:$0 sm:$0xff]
    %v144 = vsel %vm97, %v136, 0.0
    %145 = vadd.xlane.f32.xlu0 %v144
    %v146 = vpop.xlane.xlu0 %145
    %v147 = vsel %vm97, %v139, 0.0
    %148 = vadd.xlane.f32.xlu0 %v147
    %v149 = vpop.xlane.xlu0 %148
    %v150 = vrcp.pop 64.0
    %v151 = vmul.f32 %v146, %v150
    %v152 = vmul.f32 %v149, %v150
    %v153 = vsub.f32 %v136, %v151
    %v154 = vsub.f32 %v139, %v152
    %v155 = vmul.f32 %v153, %v153
    %v156 = vmul.f32 %v154, %v154
    %v157 = vsel %vm97, %v155, 0.0
    %158 = vadd.xlane.f32.xlu0 %v157
    %v159 = vpop.xlane.xlu0 %158
    %v160 = vsel %vm97, %v156, 0.0
    %161 = vadd.xlane.f32.xlu0 %v160
    %v162 = vpop.xlane.xlu0 %161
    %v163 = vmul.f32 %v159, %v150
    %v164 = vmul.f32 %v162, %v150
    %v165 = vadd.f32 %v163, 1e-05
    %v166 = vadd.f32 %v164, 1e-05
    %v167 = vrsqrt.pop %v165
    %v168 = vrsqrt.pop %v166
    %v169 = vmul.f32 %v153, %v167
    %v170 = vmul.f32 %v154, %v168
    %v171 = vmul.f32 %v169, %v142
    %v172 = vmul.f32 %v170, %v142
    %v173 = vadd.f32 %v171, %v143
    %v174 = vadd.f32 %v172, %v143
    %v175 = vld [vmem:[%s1] sm:$0xff]
    %v176 = vld [vmem:[%s1 + $0x8] sm:$0xff]
    %v177 = vld [vmem:[#allocation2 + $0x40] sm:$0xff]
    %v178 = vld [vmem:[#allocation2 + $0x48] sm:$0xff]
    %v179 = vld [vmem:[#allocation2 + $0x50] sm:$0xff]
    %v180 = vld [vmem:[#allocation2 + $0x58] sm:$0xff]
    %v181 = vld [vmem:[#allocation2 + $0x60] sm:$0xff]
    %v182 = vld [vmem:[#allocation2 + $0x68] sm:$0xff]
    %v183 = vld [vmem:[#allocation2 + $0x70] sm:$0xff]
    %v184 = vld [vmem:[#allocation2 + $0x78] sm:$0xff]
    %v185 = vpack.c.bf16 %v174, %v173
    %s186 = scalar_lea.vmem [#allocation4], 34
    %v187 = vld [vmem:[%s186] ss:$8 sm:$0x3]
    %v189 = vlaneseq
    %v190 = vshrl.u32 %v189, 7
    %v191 = vsub.s32 0, %v190
    %v192 = vrot.slane %v187, %v191
    %v193 = vlaneseq
    %v194 = vshrl.u32 %v193, 7
    %v195 = vsub.s32 1, %v194
    %v196 = vrot.slane %v187, %v195
    %v207 = vunpack.c.l.b16 %v177
    %v208 = vunpack.c.h.b16 %v177
    %v209 = vunpack.c.l.b16 %v178
    %v210 = vunpack.c.h.b16 %v178
    %v211 = vunpack.c.l.b16 %v179
    %v212 = vunpack.c.h.b16 %v179
    %v213 = vunpack.c.l.b16 %v180
    %v214 = vunpack.c.h.b16 %v180
    %v215 = vunpack.c.l.b16 %v181
    %v216 = vunpack.c.h.b16 %v181
    %v217 = vunpack.c.l.b16 %v182
    %v218 = vunpack.c.h.b16 %v182
    %v219 = vunpack.c.l.b16 %v183
    %v220 = vunpack.c.h.b16 %v183
    %v221 = vunpack.c.l.b16 %v184
    %v222 = vunpack.c.h.b16 %v184
    %v223 = vpack.c.b16 %v209, %v207
    %v224 = vpack.c.b16 %v210, %v208
    %v225 = vpack.c.b16 %v213, %v211
    %v226 = vpack.c.b16 %v214, %v212
    %v227 = vpack.c.b16 %v217, %v215
    %v228 = vpack.c.b16 %v218, %v216
    %v229 = vpack.c.b16 %v221, %v219
    %v230 = vpack.c.b16 %v222, %v220
    %v240 = vsel %vm97, %v185, 0
    %242 = vmatprep.subr.bf16.mxu0 %v224
    %243 = vmatpush1.bf16.msra.mxu0 %v223
    %244 = vmatprep.subr.bf16.mxu0 %v226
    %245 = vmatpush1.bf16.msra.mxu0 %v225
    %246 = vmatprep.subr.bf16.mxu0 %v228
    %247 = vmatpush1.bf16.msra.mxu0 %v227
    %248 = vmatprep.subr.bf16.mxu0 %v230
    %249 = vmatpush1.bf16.msra.mxu0 %v229
    %250 = vmatprep.subr.bf16.mxu0 0
    %251 = vmatpush1.bf16.msra.mxu0 0
    %252 = vmatprep.subr.bf16.mxu0 0
    %253 = vmatpush1.bf16.msra.mxu0 0
    %254 = vmatprep.subr.bf16.mxu0 0
    %255 = vmatpush1.bf16.msra.mxu0 0
    %256 = vmatprep.subr.bf16.mxu0 0
    %257 = vmatpush1.bf16.msra.mxu0 0
    %258 = vmatprep.subr.bf16.mxu0 0
    %259 = vmatpush1.bf16.msra.mxu0 0
    %260 = vmatprep.subr.bf16.mxu0 0
    %261 = vmatpush1.bf16.msra.mxu0 0
    %262 = vmatprep.subr.bf16.mxu0 0
    %263 = vmatpush1.bf16.msra.mxu0 0
    %264 = vmatprep.subr.bf16.mxu0 0
    %265 = vmatpush1.bf16.msra.mxu0 0
    %266 = vmatprep.subr.bf16.mxu0 0
    %267 = vmatpush1.bf16.msra.mxu0 0
    %268 = vmatprep.subr.bf16.mxu0 0
    %269 = vmatpush1.bf16.msra.mxu0 0
    %270 = vmatprep.subr.bf16.mxu0 0
    %271 = vmatpush1.bf16.msra.mxu0 0
    %272 = vmatprep.subr.bf16.mxu0 0
    %273 = vmatpush1.bf16.msra.mxu0 0
    %274 = vmatprep.mubr.bf16.mxu0 0
    %275 = vmatmul.mubr.bf16.gmra.mrb[0].mxu0 %v240
    %v276 = vpop.f32.mrb[0].mxu0
    %v277 = vadd.f32 %v192, %v276
    %v278 = vpop.f32.mrb[0].mxu0
    %v279 = vadd.f32 %v196, %v278
    %v280 = vpop.f32.mrb[0].mxu0
    %v281 = vadd.f32 %v192, %v280
    %v282 = vpop.f32.mrb[0].mxu0
    %v283 = vadd.f32 %v196, %v282
    %284 = vdwg.mxu0
    %v285 = vpack.c.bf16 %v281, %v277
    %287 = vrot.lane.b32.xlu0 %v285, 64
    %v288 = vpop.permute.xlu0 %287
    %vm289 = vcmask 261120
    %v291 = vsel %vm289, %v285, 0
    %v294 = vsel %vm289, %v288, 0
    %296 = vmatprep.subr.bf16.mxu0 0
    %297 = vmatpush1.bf16.xpose.msra.mxu0 %v294
    %298 = vmatprep.subr.bf16.mxu0 0
    %299 = vmatpush1.bf16.xpose.msra.mxu0 0
    %300 = vmatprep.subr.bf16.mxu0 0
    %301 = vmatpush1.bf16.xpose.msra.mxu0 0
    %302 = vmatprep.subr.bf16.mxu0 0
    %303 = vmatpush1.bf16.xpose.msra.mxu0 0
    %304 = vmatprep.subr.bf16.mxu0 0
    %305 = vmatpush1.bf16.xpose.msra.mxu0 0
    %306 = vmatprep.subr.bf16.mxu0 0
    %307 = vmatpush1.bf16.xpose.msra.mxu0 0
    %308 = vmatprep.subr.bf16.mxu0 0
    %309 = vmatpush1.bf16.xpose.msra.mxu0 0
    %310 = vmatprep.subr.bf16.mxu0 0
    %311 = vmatpush1.bf16.xpose.msra.mxu0 0
    %312 = vmatprep.subr.bf16.mxu0 0
    %313 = vmatpush1.bf16.xpose.msra.mxu0 0
    %314 = vmatprep.subr.bf16.mxu0 0
    %315 = vmatpush1.bf16.xpose.msra.mxu0 0
    %316 = vmatprep.subr.bf16.mxu0 0
    %317 = vmatpush1.bf16.xpose.msra.mxu0 0
    %318 = vmatprep.subr.bf16.mxu0 0
    %319 = vmatpush1.bf16.xpose.msra.mxu0 0
    %320 = vmatprep.subr.bf16.mxu0 0
    %321 = vmatpush1.bf16.xpose.msra.mxu0 0
    %322 = vmatprep.subr.bf16.mxu0 0
    %323 = vmatpush1.bf16.xpose.msra.mxu0 0
    %324 = vmatprep.subr.bf16.mxu0 0
    %325 = vmatpush1.bf16.xpose.msra.mxu0 0
    %326 = vmatprep.subr.bf16.mxu0 0
    %327 = vmatpush1.bf16.xpose.msra.mxu0 0
    %328 = vmatprep.mubr.bf16.mxu0 0
    %329 = vmatmul.mubr.bf16.gmra.mrb[0].mxu0 %v291
    %v330 = vpop.f32.mrb[0].mxu0
    %v331 = vadd.f32 %v175, %v330
    %v332 = vpop.f32.mrb[0].mxu0
    %v333 = vpop.f32.mrb[0].mxu0
    %v334 = vadd.f32 %v176, %v333
    %v335 = vpop.f32.mrb[0].mxu0
    %336 = vdwg.mxu0
    %vm337 = vcmask 130048
    %v338 = vsel %vm337, %v331, -inf
    %339 = vmax.xlane.f32.xlu0 %v338
    %v340 = vpop.xlane.xlu0 %339
    %v341 = vsel %vm337, %v334, -inf
    %342 = vmax.xlane.f32.xlu0 %v341
    %v343 = vpop.xlane.xlu0 %342
    %v344 = vsub.f32 %v331, %v340
    %v345 = vsub.f32 %v334, %v343
    %v346 = vmul.f32 %v344, 1.442695
    %v347 = vpow.pop %v346
    %v348 = vmul.f32 %v345, 1.442695
    %v349 = vpow.pop %v348
    %v350 = vsel %vm337, %v347, 0.0
    %351 = vadd.xlane.f32.xlu0 %v350
    %v352 = vpop.xlane.xlu0 %351
    %v353 = vsel %vm337, %v349, 0.0
    %354 = vadd.xlane.f32.xlu0 %v353
    %v355 = vpop.xlane.xlu0 %354
    %v356 = vrcp.pop %v352
    %v357 = vrcp.pop %v355
    %v358 = vmul.f32 %v347, %v356
    %v359 = vmul.f32 %v349, %v357
    %v360 = vpack.c.bf16 %v359, %v358
    %v361 = vpack.c.bf16 %v283, %v279
    %v363 = vsel %vm337, %v360, 0
    %365 = vmatprep.subr.bf16.mxu0 0
    %366 = vmatpush1.bf16.msra.mxu0 %v361
    %367 = vmatprep.subr.bf16.mxu0 0
    %368 = vmatpush1.bf16.msra.mxu0 0
    %369 = vmatprep.subr.bf16.mxu0 0
    %370 = vmatpush1.bf16.msra.mxu0 0
    %371 = vmatprep.subr.bf16.mxu0 0
    %372 = vmatpush1.bf16.msra.mxu0 0
    %373 = vmatprep.subr.bf16.mxu0 0
    %374 = vmatpush1.bf16.msra.mxu0 0
    %375 = vmatprep.subr.bf16.mxu0 0
    %376 = vmatpush1.bf16.msra.mxu0 0
    %377 = vmatprep.subr.bf16.mxu0 0
    %378 = vmatpush1.bf16.msra.mxu0 0
    %379 = vmatprep.subr.bf16.mxu0 0
    %380 = vmatpush1.bf16.msra.mxu0 0
    %381 = vmatprep.subr.bf16.mxu0 0
    %382 = vmatpush1.bf16.msra.mxu0 0
    %383 = vmatprep.subr.bf16.mxu0 0
    %384 = vmatpush1.bf16.msra.mxu0 0
    %385 = vmatprep.subr.bf16.mxu0 0
    %386 = vmatpush1.bf16.msra.mxu0 0
    %387 = vmatprep.subr.bf16.mxu0 0
    %388 = vmatpush1.bf16.msra.mxu0 0
    %389 = vmatprep.subr.bf16.mxu0 0
    %390 = vmatpush1.bf16.msra.mxu0 0
    %391 = vmatprep.subr.bf16.mxu0 0
    %392 = vmatpush1.bf16.msra.mxu0 0
    %393 = vmatprep.subr.bf16.mxu0 0
    %394 = vmatpush1.bf16.msra.mxu0 0
    %395 = vmatprep.subr.bf16.mxu0 0
    %396 = vmatpush1.bf16.msra.mxu0 0
    %397 = vmatprep.mubr.bf16.mxu0 0
    %398 = vmatmul.mubr.bf16.gmra.mrb[0].mxu0 %v363
    %v399 = vpop.f32.mrb[0].mxu0
    %v400 = vadd.f32 0.0, %v399
    %v401 = vpop.f32.mrb[0].mxu0
    %v402 = vpop.f32.mrb[0].mxu0
    %v403 = vadd.f32 0.0, %v402
    %v404 = vpop.f32.mrb[0].mxu0
    %405 = vdwg.mxu0
    %v406 = vld [vmem:[#allocation2 + $0xc0] sm:$0xf]
    %v407 = vld [vmem:[#allocation2 + $0xc8] sm:$0xf]
    %v408 = vld [vmem:[#allocation2 + $0xd0] sm:$0xf]
    %v409 = vld [vmem:[#allocation2 + $0xd8] sm:$0xf]
    %v410 = vpack.c.bf16 %v403, %v400
    %411 = vrot.lane.b32.xlu0 %v285, 96
    %v412 = vpop.permute.xlu0 %411
    %413 = vrot.lane.b32.xlu0 %v285, 32
    %v414 = vpop.permute.xlu0 %413
    %v416 = vsel %vm289, %v412, 0
    %v419 = vsel %vm289, %v414, 0
    %421 = vmatprep.subr.bf16.mxu0 0
    %422 = vmatpush1.bf16.xpose.msra.mxu0 %v419
    %423 = vmatprep.subr.bf16.mxu0 0
    %424 = vmatpush1.bf16.xpose.msra.mxu0 0
    %425 = vmatprep.subr.bf16.mxu0 0
    %426 = vmatpush1.bf16.xpose.msra.mxu0 0
    %427 = vmatprep.subr.bf16.mxu0 0
    %428 = vmatpush1.bf16.xpose.msra.mxu0 0
    %429 = vmatprep.subr.bf16.mxu0 0
    %430 = vmatpush1.bf16.xpose.msra.mxu0 0
    %431 = vmatprep.subr.bf16.mxu0 0
    %432 = vmatpush1.bf16.xpose.msra.mxu0 0
    %433 = vmatprep.subr.bf16.mxu0 0
    %434 = vmatpush1.bf16.xpose.msra.mxu0 0
    %435 = vmatprep.subr.bf16.mxu0 0
    %436 = vmatpush1.bf16.xpose.msra.mxu0 0
    %437 = vmatprep.subr.bf16.mxu0 0
    %438 = vmatpush1.bf16.xpose.msra.mxu0 0
    %439 = vmatprep.subr.bf16.mxu0 0
    %440 = vmatpush1.bf16.xpose.msra.mxu0 0
    %441 = vmatprep.subr.bf16.mxu0 0
    %442 = vmatpush1.bf16.xpose.msra.mxu0 0
    %443 = vmatprep.subr.bf16.mxu0 0
    %444 = vmatpush1.bf16.xpose.msra.mxu0 0
    %445 = vmatprep.subr.bf16.mxu0 0
    %446 = vmatpush1.bf16.xpose.msra.mxu0 0
    %447 = vmatprep.subr.bf16.mxu0 0
    %448 = vmatpush1.bf16.xpose.msra.mxu0 0
    %449 = vmatprep.subr.bf16.mxu0 0
    %450 = vmatpush1.bf16.xpose.msra.mxu0 0
    %451 = vmatprep.subr.bf16.mxu0 0
    %452 = vmatpush1.bf16.xpose.msra.mxu0 0
    %453 = vmatprep.mubr.bf16.mxu0 0
    %454 = vmatmul.mubr.bf16.gmra.mrb[0].mxu0 %v416
    %v455 = vpop.f32.mrb[0].mxu0
    %v456 = vadd.f32 %v175, %v455
    %v457 = vpop.f32.mrb[0].mxu0
    %v458 = vpop.f32.mrb[0].mxu0
    %v459 = vadd.f32 %v176, %v458
    %v460 = vpop.f32.mrb[0].mxu0
    %461 = vdwg.mxu0
    %v462 = vsel %vm337, %v456, -inf
    %463 = vmax.xlane.f32.xlu0 %v462
    %v464 = vpop.xlane.xlu0 %463
    %v465 = vsel %vm337, %v459, -inf
    %466 = vmax.xlane.f32.xlu0 %v465
    %v467 = vpop.xlane.xlu0 %466
    %v468 = vsub.f32 %v456, %v464
    %v469 = vsub.f32 %v459, %v467
    %v470 = vmul.f32 %v468, 1.442695
    %v471 = vpow.pop %v470
    %v472 = vmul.f32 %v469, 1.442695
    %v473 = vpow.pop %v472
    %v474 = vsel %vm337, %v471, 0.0
    %475 = vadd.xlane.f32.xlu0 %v474
    %v476 = vpop.xlane.xlu0 %475
    %v477 = vsel %vm337, %v473, 0.0
    %478 = vadd.xlane.f32.xlu0 %v477
    %v479 = vpop.xlane.xlu0 %478
    %v480 = vrcp.pop %v476
    %v481 = vrcp.pop %v479
    %v482 = vmul.f32 %v471, %v480
    %v483 = vmul.f32 %v473, %v481
    %v484 = vpack.c.bf16 %v483, %v482
    %486 = vrot.lane.b32.xlu0 %v361, 96
    %v487 = vpop.permute.xlu0 %486
    %v490 = vsel %vm337, %v484, 0
    %492 = vmatprep.subr.bf16.mxu0 0
    %493 = vmatpush1.bf16.msra.mxu0 %v487
    %494 = vmatprep.subr.bf16.mxu0 0
    %495 = vmatpush1.bf16.msra.mxu0 0
    %496 = vmatprep.subr.bf16.mxu0 0
    %497 = vmatpush1.bf16.msra.mxu0 0
    %498 = vmatprep.subr.bf16.mxu0 0
    %499 = vmatpush1.bf16.msra.mxu0 0
    %500 = vmatprep.subr.bf16.mxu0 0
    %501 = vmatpush1.bf16.msra.mxu0 0
    %502 = vmatprep.subr.bf16.mxu0 0
    %503 = vmatpush1.bf16.msra.mxu0 0
    %504 = vmatprep.subr.bf16.mxu0 0
    %505 = vmatpush1.bf16.msra.mxu0 0
    %506 = vmatprep.subr.bf16.mxu0 0
    %507 = vmatpush1.bf16.msra.mxu0 0
    %508 = vmatprep.subr.bf16.mxu0 0
    %509 = vmatpush1.bf16.msra.mxu0 0
    %510 = vmatprep.subr.bf16.mxu0 0
    %511 = vmatpush1.bf16.msra.mxu0 0
    %512 = vmatprep.subr.bf16.mxu0 0
    %513 = vmatpush1.bf16.msra.mxu0 0
    %514 = vmatprep.subr.bf16.mxu0 0
    %515 = vmatpush1.bf16.msra.mxu0 0
    %516 = vmatprep.subr.bf16.mxu0 0
    %517 = vmatpush1.bf16.msra.mxu0 0
    %518 = vmatprep.subr.bf16.mxu0 0
    %519 = vmatpush1.bf16.msra.mxu0 0
    %520 = vmatprep.subr.bf16.mxu0 0
    %521 = vmatpush1.bf16.msra.mxu0 0
    %522 = vmatprep.subr.bf16.mxu0 0
    %523 = vmatpush1.bf16.msra.mxu0 0
    %524 = vmatprep.mubr.bf16.mxu0 0
    %525 = vmatmul.mubr.bf16.gmra.mrb[0].mxu0 %v490
    %v526 = vpop.f32.mrb[0].mxu0
    %v527 = vadd.f32 0.0, %v526
    %v528 = vpop.f32.mrb[0].mxu0
    %v529 = vpop.f32.mrb[0].mxu0
    %v530 = vadd.f32 0.0, %v529
    %v531 = vpop.f32.mrb[0].mxu0
    %532 = vdwg.mxu0
    %v533 = vld [vmem:[#allocation2 + $0xe0] sm:$0xf]
    %v534 = vld [vmem:[#allocation2 + $0xe8] sm:$0xf]
    %v535 = vld [vmem:[#allocation2 + $0xf0] sm:$0xf]
    %v536 = vld [vmem:[#allocation2 + $0xf8] sm:$0xf]
    %v537 = vpack.c.bf16 %v530, %v527
    %v542 = vunpack.c.l.b16 %v533
    %v543 = vunpack.c.l.b16 %v534
    %v544 = vunpack.c.l.b16 %v535
    %v545 = vunpack.c.l.b16 %v536
    %v546 = vpack.c.b16 %v543, %v542
    %v547 = vpack.c.b16 %v545, %v544
    %v551 = vsel %vm289, %v537, 0
    %553 = vmatprep.subr.bf16.mxu0 0
    %554 = vmatpush1.bf16.msra.mxu0 %v546
    %555 = vmatprep.subr.bf16.mxu0 0
    %556 = vmatpush1.bf16.msra.mxu0 %v547
    %557 = vmatprep.subr.bf16.mxu0 0
    %558 = vmatpush1.bf16.msra.mxu0 0
    %559 = vmatprep.subr.bf16.mxu0 0
    %560 = vmatpush1.bf16.msra.mxu0 0
    %561 = vmatprep.subr.bf16.mxu0 0
    %562 = vmatpush1.bf16.msra.mxu0 0
    %563 = vmatprep.subr.bf16.mxu0 0
    %564 = vmatpush1.bf16.msra.mxu0 0
    %565 = vmatprep.subr.bf16.mxu0 0
    %566 = vmatpush1.bf16.msra.mxu0 0
    %567 = vmatprep.subr.bf16.mxu0 0
    %568 = vmatpush1.bf16.msra.mxu0 0
    %569 = vmatprep.subr.bf16.mxu0 0
    %570 = vmatpush1.bf16.msra.mxu0 0
    %571 = vmatprep.subr.bf16.mxu0 0
    %572 = vmatpush1.bf16.msra.mxu0 0
    %573 = vmatprep.subr.bf16.mxu0 0
    %574 = vmatpush1.bf16.msra.mxu0 0
    %575 = vmatprep.subr.bf16.mxu0 0
    %576 = vmatpush1.bf16.msra.mxu0 0
    %577 = vmatprep.subr.bf16.mxu0 0
    %578 = vmatpush1.bf16.msra.mxu0 0
    %579 = vmatprep.subr.bf16.mxu0 0
    %580 = vmatpush1.bf16.msra.mxu0 0
    %581 = vmatprep.subr.bf16.mxu0 0
    %582 = vmatpush1.bf16.msra.mxu0 0
    %583 = vmatprep.subr.bf16.mxu0 0
    %584 = vmatpush1.bf16.msra.mxu0 0
    %585 = vmatprep.mubr.bf16.mxu0 0
    %586 = vmatmul.mubr.bf16.gmra.mrb[0].mxu0 %v551
    %v587 = vpop.f32.mrb[0].mxu0
    %v588 = vadd.f32 0.0, %v587
    %v589 = vpop.f32.mrb[0].mxu0
    %v590 = vpop.f32.mrb[0].mxu0
    %v591 = vadd.f32 0.0, %v590
    %v592 = vpop.f32.mrb[0].mxu0
    %593 = vdwg.mxu0
    %v598 = vunpack.c.l.b16 %v406
    %v599 = vunpack.c.l.b16 %v407
    %v600 = vunpack.c.l.b16 %v408
    %v601 = vunpack.c.l.b16 %v409
    %v602 = vpack.c.b16 %v599, %v598
    %v603 = vpack.c.b16 %v601, %v600
    %v607 = vsel %vm289, %v410, 0
    %609 = vmatprep.subr.bf16.mxu0 0
    %610 = vmatpush1.bf16.msra.mxu0 %v602
    %611 = vmatprep.subr.bf16.mxu0 0
    %612 = vmatpush1.bf16.msra.mxu0 %v603
    %613 = vmatprep.subr.bf16.mxu0 0
    %614 = vmatpush1.bf16.msra.mxu0 0
    %615 = vmatprep.subr.bf16.mxu0 0
    %616 = vmatpush1.bf16.msra.mxu0 0
    %617 = vmatprep.subr.bf16.mxu0 0
    %618 = vmatpush1.bf16.msra.mxu0 0
    %619 = vmatprep.subr.bf16.mxu0 0
    %620 = vmatpush1.bf16.msra.mxu0 0
    %621 = vmatprep.subr.bf16.mxu0 0
    %622 = vmatpush1.bf16.msra.mxu0 0
    %623 = vmatprep.subr.bf16.mxu0 0
    %624 = vmatpush1.bf16.msra.mxu0 0
    %625 = vmatprep.subr.bf16.mxu0 0
    %626 = vmatpush1.bf16.msra.mxu0 0
    %627 = vmatprep.subr.bf16.mxu0 0
    %628 = vmatpush1.bf16.msra.mxu0 0
    %629 = vmatprep.subr.bf16.mxu0 0
    %630 = vmatpush1.bf16.msra.mxu0 0
    %631 = vmatprep.subr.bf16.mxu0 0
    %632 = vmatpush1.bf16.msra.mxu0 0
    %633 = vmatprep.subr.bf16.mxu0 0
    %634 = vmatpush1.bf16.msra.mxu0 0
    %635 = vmatprep.subr.bf16.mxu0 0
    %636 = vmatpush1.bf16.msra.mxu0 0
    %637 = vmatprep.subr.bf16.mxu0 0
    %638 = vmatpush1.bf16.msra.mxu0 0
    %639 = vmatprep.subr.bf16.mxu0 0
    %640 = vmatpush1.bf16.msra.mxu0 0
    %641 = vmatprep.mubr.bf16.mxu0 0
    %642 = vmatmul.mubr.bf16.gmra.mrb[0].mxu0 %v607
    %v643 = vpop.f32.mrb[0].mxu0
    %v644 = vadd.f32 %v588, %v643
    %v645 = vpop.f32.mrb[0].mxu0
    %v646 = vpop.f32.mrb[0].mxu0
    %v647 = vadd.f32 %v591, %v646
    %v648 = vpop.f32.mrb[0].mxu0
    %649 = vdwg.mxu0
    %v650 = vld [vmem:[#allocation4 + $0x23] ss:$0 sm:$0xff]
    %v651 = vadd.f32 %v644, %v650
    %v652 = vadd.f32 %v647, %v650
    %v653 = vadd.f32 %v651, %v173
    %v654 = vadd.f32 %v652, %v174
    %v655 = vld [vmem:[#allocation4 + $0x24] ss:$0 sm:$0xff]
    %v656 = vld [vmem:[#allocation4 + $0x25] ss:$0 sm:$0xff]
    %v657 = vsel %vm97, %v653, 0.0
    %658 = vadd.xlane.f32.xlu0 %v657
    %v659 = vpop.xlane.xlu0 %658
    %v660 = vsel %vm97, %v654, 0.0
    %661 = vadd.xlane.f32.xlu0 %v660
    %v662 = vpop.xlane.xlu0 %661
    %v663 = vmul.f32 %v659, %v150
    %v664 = vmul.f32 %v662, %v150
    %v665 = vsub.f32 %v653, %v663
    %v666 = vsub.f32 %v654, %v664
    %v667 = vmul.f32 %v665, %v665
    %v668 = vmul.f32 %v666, %v666
    %v669 = vsel %vm97, %v667, 0.0
    %670 = vadd.xlane.f32.xlu0 %v669
    %v671 = vpop.xlane.xlu0 %670
    %v672 = vsel %vm97, %v668, 0.0
    %673 = vadd.xlane.f32.xlu0 %v672
    %v674 = vpop.xlane.xlu0 %673
    %v675 = vmul.f32 %v671, %v150
    %v676 = vmul.f32 %v674, %v150
    %v677 = vadd.f32 %v675, 1e-05
    %v678 = vadd.f32 %v676, 1e-05
    %v679 = vrsqrt.pop %v677
    %v680 = vrsqrt.pop %v678
    %v681 = vmul.f32 %v665, %v679
    %v682 = vmul.f32 %v666, %v680
    %v683 = vmul.f32 %v681, %v655
    %v684 = vmul.f32 %v682, %v655
    %v685 = vadd.f32 %v683, %v656
    %v686 = vadd.f32 %v684, %v656
    %v687 = vld [vmem:[#allocation2 + $0x140] sm:$0xf]
    %v688 = vld [vmem:[#allocation2 + $0x148] sm:$0xf]
    %v689 = vld [vmem:[#allocation2 + $0x150] sm:$0xf]
    %v690 = vld [vmem:[#allocation2 + $0x158] sm:$0xf]
    %v691 = vld [vmem:[#allocation2 + $0x160] sm:$0xf]
    %v692 = vld [vmem:[#allocation2 + $0x168] sm:$0xf]
    %v693 = vld [vmem:[#allocation2 + $0x170] sm:$0xf]
    %v694 = vld [vmem:[#allocation2 + $0x178] sm:$0xf]
    %v695 = vpack.c.bf16 %v686, %v685
    %v696 = vld [vmem:[#allocation4 + $0x26] ss:$0 sm:$0xff]
    %v705 = vunpack.c.l.b16 %v687
    %v706 = vunpack.c.l.b16 %v688
    %v707 = vunpack.c.l.b16 %v689
    %v708 = vunpack.c.l.b16 %v690
    %v709 = vunpack.c.l.b16 %v691
    %v710 = vunpack.c.l.b16 %v692
    %v711 = vunpack.c.l.b16 %v693
    %v712 = vunpack.c.l.b16 %v694
    %v713 = vpack.c.b16 %v706, %v705
    %v714 = vpack.c.b16 %v708, %v707
    %v715 = vpack.c.b16 %v710, %v709
    %v716 = vpack.c.b16 %v712, %v711
    %v722 = vsel %vm97, %v695, 0
    %724 = vmatprep.subr.bf16.mxu0 0
    %725 = vmatpush1.bf16.msra.mxu0 %v713
    %726 = vmatprep.subr.bf16.mxu0 0
    %727 = vmatpush1.bf16.msra.mxu0 %v714
    %728 = vmatprep.subr.bf16.mxu0 0
    %729 = vmatpush1.bf16.msra.mxu0 %v715
    %730 = vmatprep.subr.bf16.mxu0 0
    %731 = vmatpush1.bf16.msra.mxu0 %v716
    %732 = vmatprep.subr.bf16.mxu0 0
    %733 = vmatpush1.bf16.msra.mxu0 0
    %734 = vmatprep.subr.bf16.mxu0 0
    %735 = vmatpush1.bf16.msra.mxu0 0
    %736 = vmatprep.subr.bf16.mxu0 0
    %737 = vmatpush1.bf16.msra.mxu0 0
    %738 = vmatprep.subr.bf16.mxu0 0
    %739 = vmatpush1.bf16.msra.mxu0 0
    %740 = vmatprep.subr.bf16.mxu0 0
    %741 = vmatpush1.bf16.msra.mxu0 0
    %742 = vmatprep.subr.bf16.mxu0 0
    %743 = vmatpush1.bf16.msra.mxu0 0
    %744 = vmatprep.subr.bf16.mxu0 0
    %745 = vmatpush1.bf16.msra.mxu0 0
    %746 = vmatprep.subr.bf16.mxu0 0
    %747 = vmatpush1.bf16.msra.mxu0 0
    %748 = vmatprep.subr.bf16.mxu0 0
    %749 = vmatpush1.bf16.msra.mxu0 0
    %750 = vmatprep.subr.bf16.mxu0 0
    %751 = vmatpush1.bf16.msra.mxu0 0
    %752 = vmatprep.subr.bf16.mxu0 0
    %753 = vmatpush1.bf16.msra.mxu0 0
    %754 = vmatprep.subr.bf16.mxu0 0
    %755 = vmatpush1.bf16.msra.mxu0 0
    %756 = vmatprep.mubr.bf16.mxu0 0
    %757 = vmatmul.mubr.bf16.gmra.mrb[0].mxu0 %v722
    %v758 = vpop.f32.mrb[0].mxu0
    %v759 = vadd.f32 %v696, %v758
    %v760 = vpop.f32.mrb[0].mxu0
    %v761 = vpop.f32.mrb[0].mxu0
    %v762 = vadd.f32 %v696, %v761
    %v763 = vpop.f32.mrb[0].mxu0
    %764 = vdwg.mxu0
    %v765 = vmul.f32 %v759, %v759
    %v766 = vmul.f32 %v762, %v762
    %v767 = vmul.f32 %v759, %v765
    %v768 = vmul.f32 %v762, %v766
    %v769 = vmul.f32 %v767, 0.044715
    %v770 = vmul.f32 %v768, 0.044715
    %v771 = vadd.f32 %v759, %v769
    %v772 = vadd.f32 %v762, %v770
    %v773 = vmul.f32 %v771, 0.7978846
    %v774 = vmul.f32 %v772, 0.7978846
    %v775 = vtanh.pop %v773
    %v776 = vtanh.pop %v774
    %v777 = vadd.f32 %v775, 1.0
    %v778 = vadd.f32 %v776, 1.0
    %v779 = vmul.f32 %v777, 0.5
    %v780 = vmul.f32 %v778, 0.5
    %v781 = vmul.f32 %v759, %v779
    %v782 = vmul.f32 %v762, %v780
    %v783 = vld [vmem:[#allocation2 + $0x1c0] sm:$0xf]
    %v784 = vld [vmem:[#allocation2 + $0x1c8] sm:$0xf]
    %v785 = vld [vmem:[#allocation2 + $0x1d0] sm:$0xf]
    %v786 = vld [vmem:[#allocation2 + $0x1d8] sm:$0xf]
    %v787 = vld [vmem:[#allocation2 + $0x1e0] sm:$0xf]
    %v788 = vld [vmem:[#allocation2 + $0x1e8] sm:$0xf]
    %v789 = vld [vmem:[#allocation2 + $0x1f0] sm:$0xf]
    %v790 = vld [vmem:[#allocation2 + $0x1f8] sm:$0xf]
    %v791 = vld [vmem:[#allocation2 + $0x200] sm:$0xf]
    %v792 = vld [vmem:[#allocation2 + $0x208] sm:$0xf]
    %v793 = vld [vmem:[#allocation2 + $0x210] sm:$0xf]
    %v794 = vld [vmem:[#allocation2 + $0x218] sm:$0xf]
    %v795 = vld [vmem:[#allocation2 + $0x220] sm:$0xf]
    %v796 = vld [vmem:[#allocation2 + $0x228] sm:$0xf]
    %v797 = vld [vmem:[#allocation2 + $0x230] sm:$0xf]
    %v798 = vld [vmem:[#allocation2 + $0x238] sm:$0xf]
    %v799 = vpack.c.bf16 %v782, %v781
    %v800 = vld [vmem:[#allocation4 + $0x27] ss:$0 sm:$0xff]
    %v817 = vunpack.c.l.b16 %v783
    %v818 = vunpack.c.l.b16 %v784
    %v819 = vunpack.c.l.b16 %v785
    %v820 = vunpack.c.l.b16 %v786
    %v821 = vunpack.c.l.b16 %v787
    %v822 = vunpack.c.l.b16 %v788
    %v823 = vunpack.c.l.b16 %v789
    %v824 = vunpack.c.l.b16 %v790
    %v825 = vunpack.c.l.b16 %v791
    %v826 = vunpack.c.l.b16 %v792
    %v827 = vunpack.c.l.b16 %v793
    %v828 = vunpack.c.l.b16 %v794
    %v829 = vunpack.c.l.b16 %v795
    %v830 = vunpack.c.l.b16 %v796
    %v831 = vunpack.c.l.b16 %v797
    %v832 = vunpack.c.l.b16 %v798
    %v833 = vpack.c.b16 %v818, %v817
    %v834 = vpack.c.b16 %v820, %v819
    %v835 = vpack.c.b16 %v822, %v821
    %v836 = vpack.c.b16 %v824, %v823
    %v837 = vpack.c.b16 %v826, %v825
    %v838 = vpack.c.b16 %v828, %v827
    %v839 = vpack.c.b16 %v830, %v829
    %v840 = vpack.c.b16 %v832, %v831
    %849 = vmatprep.subr.bf16.mxu0 0
    %850 = vmatpush1.bf16.msra.mxu0 %v833
    %851 = vmatprep.subr.bf16.mxu0 0
    %852 = vmatpush1.bf16.msra.mxu0 %v834
    %853 = vmatprep.subr.bf16.mxu0 0
    %854 = vmatpush1.bf16.msra.mxu0 %v835
    %855 = vmatprep.subr.bf16.mxu0 0
    %856 = vmatpush1.bf16.msra.mxu0 %v836
    %857 = vmatprep.subr.bf16.mxu0 0
    %858 = vmatpush1.bf16.msra.mxu0 %v837
    %859 = vmatprep.subr.bf16.mxu0 0
    %860 = vmatpush1.bf16.msra.mxu0 %v838
    %861 = vmatprep.subr.bf16.mxu0 0
    %862 = vmatpush1.bf16.msra.mxu0 %v839
    %863 = vmatprep.subr.bf16.mxu0 0
    %864 = vmatpush1.bf16.msra.mxu0 %v840
    %865 = vmatprep.subr.bf16.mxu0 0
    %866 = vmatpush1.bf16.msra.mxu0 0
    %867 = vmatprep.subr.bf16.mxu0 0
    %868 = vmatpush1.bf16.msra.mxu0 0
    %869 = vmatprep.subr.bf16.mxu0 0
    %870 = vmatpush1.bf16.msra.mxu0 0
    %871 = vmatprep.subr.bf16.mxu0 0
    %872 = vmatpush1.bf16.msra.mxu0 0
    %873 = vmatprep.subr.bf16.mxu0 0
    %874 = vmatpush1.bf16.msra.mxu0 0
    %875 = vmatprep.subr.bf16.mxu0 0
    %876 = vmatpush1.bf16.msra.mxu0 0
    %877 = vmatprep.subr.bf16.mxu0 0
    %878 = vmatpush1.bf16.msra.mxu0 0
    %879 = vmatprep.subr.bf16.mxu0 0
    %880 = vmatpush1.bf16.msra.mxu0 0
    %881 = vmatprep.mubr.bf16.mxu0 0
    %882 = vmatmul.mubr.bf16.gmra.mrb[0].mxu0 %v799
    %v883 = vpop.f32.mrb[0].mxu0
    %v884 = vadd.f32 %v800, %v883
    %v885 = vpop.f32.mrb[0].mxu0
    %v886 = vpop.f32.mrb[0].mxu0
    %v887 = vadd.f32 %v800, %v886
    %v888 = vpop.f32.mrb[0].mxu0
    %889 = vdwg.mxu0
    %v890 = vadd.f32 %v884, %v685
    %v891 = vadd.f32 %v887, %v686
    %v892 = vld [vmem:[#allocation4 + $0x30] ss:$0 sm:$0xff]
    %v893 = vld [vmem:[#allocation4 + $0x31] ss:$0 sm:$0xff]
    %v894 = vsel %vm97, %v890, 0.0
    %895 = vadd.xlane.f32.xlu0 %v894
    %v896 = vpop.xlane.xlu0 %895
    %v897 = vsel %vm97, %v891, 0.0
    %898 = vadd.xlane.f32.xlu0 %v897
    %v899 = vpop.xlane.xlu0 %898
    %v900 = vmul.f32 %v896, %v150
    %v901 = vmul.f32 %v899, %v150
    %v902 = vsub.f32 %v890, %v900
    %v903 = vsub.f32 %v891, %v901
    %v904 = vmul.f32 %v902, %v902
    %v905 = vmul.f32 %v903, %v903
    %v906 = vsel %vm97, %v904, 0.0
    %907 = vadd.xlane.f32.xlu0 %v906
    %v908 = vpop.xlane.xlu0 %907
    %v909 = vsel %vm97, %v905, 0.0
    %910 = vadd.xlane.f32.xlu0 %v909
    %v911 = vpop.xlane.xlu0 %910
    %v912 = vmul.f32 %v908, %v150
    %v913 = vmul.f32 %v911, %v150
    %v914 = vadd.f32 %v912, 1e-05
    %v915 = vadd.f32 %v913, 1e-05
    %v916 = vrsqrt.pop %v914
    %v917 = vrsqrt.pop %v915
    %v918 = vmul.f32 %v902, %v916
    %v919 = vmul.f32 %v903, %v917
    %v920 = vmul.f32 %v918, %v892
    %v921 = vmul.f32 %v919, %v892
    %v922 = vadd.f32 %v920, %v893
    %v923 = vadd.f32 %v921, %v893
    %v924 = vld [vmem:[#allocation2 + $0x80] sm:$0xff]
    %v925 = vld [vmem:[#allocation2 + $0x88] sm:$0xff]
    %v926 = vld [vmem:[#allocation2 + $0x90] sm:$0xff]
    %v927 = vld [vmem:[#allocation2 + $0x98] sm:$0xff]
    %v928 = vld [vmem:[#allocation2 + $0xa0] sm:$0xff]
    %v929 = vld [vmem:[#allocation2 + $0xa8] sm:$0xff]
    %v930 = vld [vmem:[#allocation2 + $0xb0] sm:$0xff]
    %v931 = vld [vmem:[#allocation2 + $0xb8] sm:$0xff]
    %v932 = vpack.c.bf16 %v923, %v922
    %s933 = scalar_lea.vmem [#allocation4], 50
    %v934 = vld [vmem:[%s933] ss:$8 sm:$0x3]
    %v936 = vlaneseq
    %v937 = vshrl.u32 %v936, 7
    %v938 = vsub.s32 0, %v937
    %v939 = vrot.slane %v934, %v938
    %v940 = vlaneseq
    %v941 = vshrl.u32 %v940, 7
    %v942 = vsub.s32 1, %v941
    %v943 = vrot.slane %v934, %v942
    %v954 = vunpack.c.l.b16 %v924
    %v955 = vunpack.c.h.b16 %v924
    %v956 = vunpack.c.l.b16 %v925
    %v957 = vunpack.c.h.b16 %v925
    %v958 = vunpack.c.l.b16 %v926
    %v959 = vunpack.c.h.b16 %v926
    %v960 = vunpack.c.l.b16 %v927
    %v961 = vunpack.c.h.b16 %v927
    %v962 = vunpack.c.l.b16 %v928
    %v963 = vunpack.c.h.b16 %v928
    %v964 = vunpack.c.l.b16 %v929
    %v965 = vunpack.c.h.b16 %v929
    %v966 = vunpack.c.l.b16 %v930
    %v967 = vunpack.c.h.b16 %v930
    %v968 = vunpack.c.l.b16 %v931
    %v969 = vunpack.c.h.b16 %v931
    %v970 = vpack.c.b16 %v956, %v954
    %v971 = vpack.c.b16 %v957, %v955
    %v972 = vpack.c.b16 %v960, %v958
    %v973 = vpack.c.b16 %v961, %v959
    %v974 = vpack.c.b16 %v964, %v962
    %v975 = vpack.c.b16 %v965, %v963
    %v976 = vpack.c.b16 %v968, %v966
    %v977 = vpack.c.b16 %v969, %v967
    %v987 = vsel %vm97, %v932, 0
    %989 = vmatprep.subr.bf16.mxu0 %v971
    %990 = vmatpush1.bf16.msra.mxu0 %v970
    %991 = vmatprep.subr.bf16.mxu0 %v973
    %992 = vmatpush1.bf16.msra.mxu0 %v972
    %993 = vmatprep.subr.bf16.mxu0 %v975
    %994 = vmatpush1.bf16.msra.mxu0 %v974
    %995 = vmatprep.subr.bf16.mxu0 %v977
    %996 = vmatpush1.bf16.msra.mxu0 %v976
    %997 = vmatprep.subr.bf16.mxu0 0
    %998 = vmatpush1.bf16.msra.mxu0 0
    %999 = vmatprep.subr.bf16.mxu0 0
    %1000 = vmatpush1.bf16.msra.mxu0 0
    %1001 = vmatprep.subr.bf16.mxu0 0
    %1002 = vmatpush1.bf16.msra.mxu0 0
    %1003 = vmatprep.subr.bf16.mxu0 0
    %1004 = vmatpush1.bf16.msra.mxu0 0
    %1005 = vmatprep.subr.bf16.mxu0 0
    %1006 = vmatpush1.bf16.msra.mxu0 0
    %1007 = vmatprep.subr.bf16.mxu0 0
    %1008 = vmatpush1.bf16.msra.mxu0 0
    %1009 = vmatprep.subr.bf16.mxu0 0
    %1010 = vmatpush1.bf16.msra.mxu0 0
    %1011 = vmatprep.subr.bf16.mxu0 0
    %1012 = vmatpush1.bf16.msra.mxu0 0
    %1013 = vmatprep.subr.bf16.mxu0 0
    %1014 = vmatpush1.bf16.msra.mxu0 0
    %1015 = vmatprep.subr.bf16.mxu0 0
    %1016 = vmatpush1.bf16.msra.mxu0 0
    %1017 = vmatprep.subr.bf16.mxu0 0
    %1018 = vmatpush1.bf16.msra.mxu0 0
    %1019 = vmatprep.subr.bf16.mxu0 0
    %1020 = vmatpush1.bf16.msra.mxu0 0
    %1021 = vmatprep.mubr.bf16.mxu0 0
    %1022 = vmatmul.mubr.bf16.gmra.mrb[0].mxu0 %v987
    %v1023 = vpop.f32.mrb[0].mxu0
    %v1024 = vadd.f32 %v939, %v1023
    %v1025 = vpop.f32.mrb[0].mxu0
    %v1026 = vadd.f32 %v943, %v1025
    %v1027 = vpop.f32.mrb[0].mxu0
    %v1028 = vadd.f32 %v939, %v1027
    %v1029 = vpop.f32.mrb[0].mxu0
    %v1030 = vadd.f32 %v943, %v1029
    %1031 = vdwg.mxu0
    %v1032 = vpack.c.bf16 %v1028, %v1024
    %1034 = vrot.lane.b32.xlu0 %v1032, 64
    %v1035 = vpop.permute.xlu0 %1034
    %v1037 = vsel %vm289, %v1032, 0
    %v1040 = vsel %vm289, %v1035, 0
    %1042 = vmatprep.subr.bf16.mxu0 0
    %1043 = vmatpush1.bf16.xpose.msra.mxu0 %v1040
    %1044 = vmatprep.subr.bf16.mxu0 0
    %1045 = vmatpush1.bf16.xpose.msra.mxu0 0
    %1046 = vmatprep.subr.bf16.mxu0 0
    %1047 = vmatpush1.bf16.xpose.msra.mxu0 0
    %1048 = vmatprep.subr.bf16.mxu0 0
    %1049 = vmatpush1.bf16.xpose.msra.mxu0 0
    %1050 = vmatprep.subr.bf16.mxu0 0
    %1051 = vmatpush1.bf16.xpose.msra.mxu0 0
    %1052 = vmatprep.subr.bf16.mxu0 0
    %1053 = vmatpush1.bf16.xpose.msra.mxu0 0
    %1054 = vmatprep.subr.bf16.mxu0 0
    %1055 = vmatpush1.bf16.xpose.msra.mxu0 0
    %1056 = vmatprep.subr.bf16.mxu0 0
    %1057 = vmatpush1.bf16.xpose.msra.mxu0 0
    %1058 = vmatprep.subr.bf16.mxu0 0
    %1059 = vmatpush1.bf16.xpose.msra.mxu0 0
    %1060 = vmatprep.subr.bf16.mxu0 0
    %1061 = vmatpush1.bf16.xpose.msra.mxu0 0
    %1062 = vmatprep.subr.bf16.mxu0 0
    %1063 = vmatpush1.bf16.xpose.msra.mxu0 0
    %1064 = vmatprep.subr.bf16.mxu0 0
    %1065 = vmatpush1.bf16.xpose.msra.mxu0 0
    %1066 = vmatprep.subr.bf16.mxu0 0
    %1067 = vmatpush1.bf16.xpose.msra.mxu0 0
    %1068 = vmatprep.subr.bf16.mxu0 0
    %1069 = vmatpush1.bf16.xpose.msra.mxu0 0
    %1070 = vmatprep.subr.bf16.mxu0 0
    %1071 = vmatpush1.bf16.xpose.msra.mxu0 0
    %1072 = vmatprep.subr.bf16.mxu0 0
    %1073 = vmatpush1.bf16.xpose.msra.mxu0 0
    %1074 = vmatprep.mubr.bf16.mxu0 0
    %1075 = vmatmul.mubr.bf16.gmra.mrb[0].mxu0 %v1037
    %v1076 = vpop.f32.mrb[0].mxu0
    %v1077 = vadd.f32 %v175, %v1076
    %v1078 = vpop.f32.mrb[0].mxu0
    %v1079 = vpop.f32.mrb[0].mxu0
    %v1080 = vadd.f32 %v176, %v1079
    %v1081 = vpop.f32.mrb[0].mxu0
    %1082 = vdwg.mxu0
    %v1083 = vsel %vm337, %v1077, -inf
    %1084 = vmax.xlane.f32.xlu0 %v1083
    %v1085 = vpop.xlane.xlu0 %1084
    %v1086 = vsel %vm337, %v1080, -inf
    %1087 = vmax.xlane.f32.xlu0 %v1086
    %v1088 = vpop.xlane.xlu0 %1087
    %v1089 = vsub.f32 %v1077, %v1085
    %v1090 = vsub.f32 %v1080, %v1088
    %v1091 = vmul.f32 %v1089, 1.442695
    %v1092 = vpow.pop %v1091
    %v1093 = vmul.f32 %v1090, 1.442695
    %v1094 = vpow.pop %v1093
    %v1095 = vsel %vm337, %v1092, 0.0
    %1096 = vadd.xlane.f32.xlu0 %v1095
    %v1097 = vpop.xlane.xlu0 %1096
    %v1098 = vsel %vm337, %v1094, 0.0
    %1099 = vadd.xlane.f32.xlu0 %v1098
    %v1100 = vpop.xlane.xlu0 %1099
    %v1101 = vrcp.pop %v1097
    %v1102 = vrcp.pop %v1100
    %v1103 = vmul.f32 %v1092, %v1101
    %v1104 = vmul.f32 %v1094, %v1102
    %v1105 = vpack.c.bf16 %v1104, %v1103
    %v1106 = vpack.c.bf16 %v1030, %v1026
    %v1108 = vsel %vm337, %v1105, 0
    %1110 = vmatprep.subr.bf16.mxu0 0
    %1111 = vmatpush1.bf16.msra.mxu0 %v1106
    %1112 = vmatprep.subr.bf16.mxu0 0
    %1113 = vmatpush1.bf16.msra.mxu0 0
    %1114 = vmatprep.subr.bf16.mxu0 0
    %1115 = vmatpush1.bf16.msra.mxu0 0
    %1116 = vmatprep.subr.bf16.mxu0 0
    %1117 = vmatpush1.bf16.msra.mxu0 0
    %1118 = vmatprep.subr.bf16.mxu0 0
    %1119 = vmatpush1.bf16.msra.mxu0 0
    %1120 = vmatprep.subr.bf16.mxu0 0
    %1121 = vmatpush1.bf16.msra.mxu0 0
    %1122 = vmatprep.subr.bf16.mxu0 0
    %1123 = vmatpush1.bf16.msra.mxu0 0
    %1124 = vmatprep.subr.bf16.mxu0 0
    %1125 = vmatpush1.bf16.msra.mxu0 0
    %1126 = vmatprep.subr.bf16.mxu0 0
    %1127 = vmatpush1.bf16.msra.mxu0 0
    %1128 = vmatprep.subr.bf16.mxu0 0
    %1129 = vmatpush1.bf16.msra.mxu0 0
    %1130 = vmatprep.subr.bf16.mxu0 0
    %1131 = vmatpush1.bf16.msra.mxu0 0
    %1132 = vmatprep.subr.bf16.mxu0 0
    %1133 = vmatpush1.bf16.msra.mxu0 0
    %1134 = vmatprep.subr.bf16.mxu0 0
    %1135 = vmatpush1.bf16.msra.mxu0 0
    %1136 = vmatprep.subr.bf16.mxu0 0
    %1137 = vmatpush1.bf16.msra.mxu0 0
    %1138 = vmatprep.subr.bf16.mxu0 0
    %1139 = vmatpush1.bf16.msra.mxu0 0
    %1140 = vmatprep.subr.bf16.mxu0 0
    %1141 = vmatpush1.bf16.msra.mxu0 0
    %1142 = vmatprep.mubr.bf16.mxu0 0
    %1143 = vmatmul.mubr.bf16.gmra.mrb[0].mxu0 %v1108
    %v1144 = vpop.f32.mrb[0].mxu0
    %v1145 = vadd.f32 0.0, %v1144
    %v1146 = vpop.f32.mrb[0].mxu0
    %v1147 = vpop.f32.mrb[0].mxu0
    %v1148 = vadd.f32 0.0, %v1147
    %v1149 = vpop.f32.mrb[0].mxu0
    %1150 = vdwg.mxu0
    %v1151 = vld [vmem:[#allocation2 + $0x100] sm:$0xf]
    %v1152 = vld [vmem:[#allocation2 + $0x108] sm:$0xf]
    %v1153 = vld [vmem:[#allocation2 + $0x110] sm:$0xf]
    %v1154 = vld [vmem:[#allocation2 + $0x118] sm:$0xf]
    %v1155 = vpack.c.bf16 %v1148, %v1145
    %1156 = vrot.lane.b32.xlu0 %v1032, 96
    %v1157 = vpop.permute.xlu0 %1156
    %1158 = vrot.lane.b32.xlu0 %v1032, 32
    %v1159 = vpop.permute.xlu0 %1158
    %v1161 = vsel %vm289, %v1157, 0
    %v1164 = vsel %vm289, %v1159, 0
    %1166 = vmatprep.subr.bf16.mxu0 0
    %1167 = vmatpush1.bf16.xpose.msra.mxu0 %v1164
    %1168 = vmatprep.subr.bf16.mxu0 0
    %1169 = vmatpush1.bf16.xpose.msra.mxu0 0
    %1170 = vmatprep.subr.bf16.mxu0 0
    %1171 = vmatpush1.bf16.xpose.msra.mxu0 0
    %1172 = vmatprep.subr.bf16.mxu0 0
    %1173 = vmatpush1.bf16.xpose.msra.mxu0 0
    %1174 = vmatprep.subr.bf16.mxu0 0
    %1175 = vmatpush1.bf16.xpose.msra.mxu0 0
    %1176 = vmatprep.subr.bf16.mxu0 0
    %1177 = vmatpush1.bf16.xpose.msra.mxu0 0
    %1178 = vmatprep.subr.bf16.mxu0 0
    %1179 = vmatpush1.bf16.xpose.msra.mxu0 0
    %1180 = vmatprep.subr.bf16.mxu0 0
    %1181 = vmatpush1.bf16.xpose.msra.mxu0 0
    %1182 = vmatprep.subr.bf16.mxu0 0
    %1183 = vmatpush1.bf16.xpose.msra.mxu0 0
    %1184 = vmatprep.subr.bf16.mxu0 0
    %1185 = vmatpush1.bf16.xpose.msra.mxu0 0
    %1186 = vmatprep.subr.bf16.mxu0 0
    %1187 = vmatpush1.bf16.xpose.msra.mxu0 0
    %1188 = vmatprep.subr.bf16.mxu0 0
    %1189 = vmatpush1.bf16.xpose.msra.mxu0 0
    %1190 = vmatprep.subr.bf16.mxu0 0
    %1191 = vmatpush1.bf16.xpose.msra.mxu0 0
    %1192 = vmatprep.subr.bf16.mxu0 0
    %1193 = vmatpush1.bf16.xpose.msra.mxu0 0
    %1194 = vmatprep.subr.bf16.mxu0 0
    %1195 = vmatpush1.bf16.xpose.msra.mxu0 0
    %1196 = vmatprep.subr.bf16.mxu0 0
    %1197 = vmatpush1.bf16.xpose.msra.mxu0 0
    %1198 = vmatprep.mubr.bf16.mxu0 0
    %1199 = vmatmul.mubr.bf16.gmra.mrb[0].mxu0 %v1161
    %v1200 = vpop.f32.mrb[0].mxu0
    %v1201 = vadd.f32 %v175, %v1200
    %v1202 = vpop.f32.mrb[0].mxu0
    %v1203 = vpop.f32.mrb[0].mxu0
    %v1204 = vadd.f32 %v176, %v1203
    %v1205 = vpop.f32.mrb[0].mxu0
    %1206 = vdwg.mxu0
    %v1207 = vsel %vm337, %v1201, -inf
    %1208 = vmax.xlane.f32.xlu0 %v1207
    %v1209 = vpop.xlane.xlu0 %1208
    %v1210 = vsel %vm337, %v1204, -inf
    %1211 = vmax.xlane.f32.xlu0 %v1210
    %v1212 = vpop.xlane.xlu0 %1211
    %v1213 = vsub.f32 %v1201, %v1209
    %v1214 = vsub.f32 %v1204, %v1212
    %v1215 = vmul.f32 %v1213, 1.442695
    %v1216 = vpow.pop %v1215
    %v1217 = vmul.f32 %v1214, 1.442695
    %v1218 = vpow.pop %v1217
    %v1219 = vsel %vm337, %v1216, 0.0
    %1220 = vadd.xlane.f32.xlu0 %v1219
    %v1221 = vpop.xlane.xlu0 %1220
    %v1222 = vsel %vm337, %v1218, 0.0
    %1223 = vadd.xlane.f32.xlu0 %v1222
    %v1224 = vpop.xlane.xlu0 %1223
    %v1225 = vrcp.pop %v1221
    %v1226 = vrcp.pop %v1224
    %v1227 = vmul.f32 %v1216, %v1225
    %v1228 = vmul.f32 %v1218, %v1226
    %v1229 = vpack.c.bf16 %v1228, %v1227
    %1231 = vrot.lane.b32.xlu0 %v1106, 96
    %v1232 = vpop.permute.xlu0 %1231
    %v1235 = vsel %vm337, %v1229, 0
    %1237 = vmatprep.subr.bf16.mxu0 0
    %1238 = vmatpush1.bf16.msra.mxu0 %v1232
    %1239 = vmatprep.subr.bf16.mxu0 0
    %1240 = vmatpush1.bf16.msra.mxu0 0
    %1241 = vmatprep.subr.bf16.mxu0 0
    %1242 = vmatpush1.bf16.msra.mxu0 0
    %1243 = vmatprep.subr.bf16.mxu0 0
    %1244 = vmatpush1.bf16.msra.mxu0 0
    %1245 = vmatprep.subr.bf16.mxu0 0
    %1246 = vmatpush1.bf16.msra.mxu0 0
    %1247 = vmatprep.subr.bf16.mxu0 0
    %1248 = vmatpush1.bf16.msra.mxu0 0
    %1249 = vmatprep.subr.bf16.mxu0 0
    %1250 = vmatpush1.bf16.msra.mxu0 0
    %1251 = vmatprep.subr.bf16.mxu0 0
    %1252 = vmatpush1.bf16.msra.mxu0 0
    %1253 = vmatprep.subr.bf16.mxu0 0
    %1254 = vmatpush1.bf16.msra.mxu0 0
    %1255 = vmatprep.subr.bf16.mxu0 0
    %1256 = vmatpush1.bf16.msra.mxu0 0
    %1257 = vmatprep.subr.bf16.mxu0 0
    %1258 = vmatpush1.bf16.msra.mxu0 0
    %1259 = vmatprep.subr.bf16.mxu0 0
    %1260 = vmatpush1.bf16.msra.mxu0 0
    %1261 = vmatprep.subr.bf16.mxu0 0
    %1262 = vmatpush1.bf16.msra.mxu0 0
    %1263 = vmatprep.subr.bf16.mxu0 0
    %1264 = vmatpush1.bf16.msra.mxu0 0
    %1265 = vmatprep.subr.bf16.mxu0 0
    %1266 = vmatpush1.bf16.msra.mxu0 0
    %1267 = vmatprep.subr.bf16.mxu0 0
    %1268 = vmatpush1.bf16.msra.mxu0 0
    %1269 = vmatprep.mubr.bf16.mxu0 0
    %1270 = vmatmul.mubr.bf16.gmra.mrb[0].mxu0 %v1235
    %v1271 = vpop.f32.mrb[0].mxu0
    %v1272 = vadd.f32 0.0, %v1271
    %v1273 = vpop.f32.mrb[0].mxu0
    %v1274 = vpop.f32.mrb[0].mxu0
    %v1275 = vadd.f32 0.0, %v1274
    %v1276 = vpop.f32.mrb[0].mxu0
    %1277 = vdwg.mxu0
    %v1278 = vld [vmem:[#allocation2 + $0x120] sm:$0xf]
    %v1279 = vld [vmem:[#allocation2 + $0x128] sm:$0xf]
    %v1280 = vld [vmem:[#allocation2 + $0x130] sm:$0xf]
    %v1281 = vld [vmem:[#allocation2 + $0x138] sm:$0xf]
    %v1282 = vpack.c.bf16 %v1275, %v1272
    %v1287 = vunpack.c.l.b16 %v1278
    %v1288 = vunpack.c.l.b16 %v1279
    %v1289 = vunpack.c.l.b16 %v1280
    %v1290 = vunpack.c.l.b16 %v1281
    %v1291 = vpack.c.b16 %v1288, %v1287
    %v1292 = vpack.c.b16 %v1290, %v1289
    %v1296 = vsel %vm289, %v1282, 0
    %1298 = vmatprep.subr.bf16.mxu0 0
    %1299 = vmatpush1.bf16.msra.mxu0 %v1291
    %1300 = vmatprep.subr.bf16.mxu0 0
    %1301 = vmatpush1.bf16.msra.mxu0 %v1292
    %1302 = vmatprep.subr.bf16.mxu0 0
    %1303 = vmatpush1.bf16.msra.mxu0 0
    %1304 = vmatprep.subr.bf16.mxu0 0
    %1305 = vmatpush1.bf16.msra.mxu0 0
    %1306 = vmatprep.subr.bf16.mxu0 0
    %1307 = vmatpush1.bf16.msra.mxu0 0
    %1308 = vmatprep.subr.bf16.mxu0 0
    %1309 = vmatpush1.bf16.msra.mxu0 0
    %1310 = vmatprep.subr.bf16.mxu0 0
    %1311 = vmatpush1.bf16.msra.mxu0 0
    %1312 = vmatprep.subr.bf16.mxu0 0
    %1313 = vmatpush1.bf16.msra.mxu0 0
    %1314 = vmatprep.subr.bf16.mxu0 0
    %1315 = vmatpush1.bf16.msra.mxu0 0
    %1316 = vmatprep.subr.bf16.mxu0 0
    %1317 = vmatpush1.bf16.msra.mxu0 0
    %1318 = vmatprep.subr.bf16.mxu0 0
    %1319 = vmatpush1.bf16.msra.mxu0 0
    %1320 = vmatprep.subr.bf16.mxu0 0
    %1321 = vmatpush1.bf16.msra.mxu0 0
    %1322 = vmatprep.subr.bf16.mxu0 0
    %1323 = vmatpush1.bf16.msra.mxu0 0
    %1324 = vmatprep.subr.bf16.mxu0 0
    %1325 = vmatpush1.bf16.msra.mxu0 0
    %1326 = vmatprep.subr.bf16.mxu0 0
    %1327 = vmatpush1.bf16.msra.mxu0 0
    %1328 = vmatprep.subr.bf16.mxu0 0
    %1329 = vmatpush1.bf16.msra.mxu0 0
    %1330 = vmatprep.mubr.bf16.mxu0 0
    %1331 = vmatmul.mubr.bf16.gmra.mrb[0].mxu0 %v1296
    %v1332 = vpop.f32.mrb[0].mxu0
    %v1333 = vadd.f32 0.0, %v1332
    %v1334 = vpop.f32.mrb[0].mxu0
    %v1335 = vpop.f32.mrb[0].mxu0
    %v1336 = vadd.f32 0.0, %v1335
    %v1337 = vpop.f32.mrb[0].mxu0
    %1338 = vdwg.mxu0
    %v1343 = vunpack.c.l.b16 %v1151
    %v1344 = vunpack.c.l.b16 %v1152
    %v1345 = vunpack.c.l.b16 %v1153
    %v1346 = vunpack.c.l.b16 %v1154
    %v1347 = vpack.c.b16 %v1344, %v1343
    %v1348 = vpack.c.b16 %v1346, %v1345
    %v1352 = vsel %vm289, %v1155, 0
    %1354 = vmatprep.subr.bf16.mxu0 0
    %1355 = vmatpush1.bf16.msra.mxu0 %v1347
    %1356 = vmatprep.subr.bf16.mxu0 0
    %1357 = vmatpush1.bf16.msra.mxu0 %v1348
    %1358 = vmatprep.subr.bf16.mxu0 0
    %1359 = vmatpush1.bf16.msra.mxu0 0
    %1360 = vmatprep.subr.bf16.mxu0 0
    %1361 = vmatpush1.bf16.msra.mxu0 0
    %1362 = vmatprep.subr.bf16.mxu0 0
    %1363 = vmatpush1.bf16.msra.mxu0 0
    %1364 = vmatprep.subr.bf16.mxu0 0
    %1365 = vmatpush1.bf16.msra.mxu0 0
    %1366 = vmatprep.subr.bf16.mxu0 0
    %1367 = vmatpush1.bf16.msra.mxu0 0
    %1368 = vmatprep.subr.bf16.mxu0 0
    %1369 = vmatpush1.bf16.msra.mxu0 0
    %1370 = vmatprep.subr.bf16.mxu0 0
    %1371 = vmatpush1.bf16.msra.mxu0 0
    %1372 = vmatprep.subr.bf16.mxu0 0
    %1373 = vmatpush1.bf16.msra.mxu0 0
    %1374 = vmatprep.subr.bf16.mxu0 0
    %1375 = vmatpush1.bf16.msra.mxu0 0
    %1376 = vmatprep.subr.bf16.mxu0 0
    %1377 = vmatpush1.bf16.msra.mxu0 0
    %1378 = vmatprep.subr.bf16.mxu0 0
    %1379 = vmatpush1.bf16.msra.mxu0 0
    %1380 = vmatprep.subr.bf16.mxu0 0
    %1381 = vmatpush1.bf16.msra.mxu0 0
    %1382 = vmatprep.subr.bf16.mxu0 0
    %1383 = vmatpush1.bf16.msra.mxu0 0
    %1384 = vmatprep.subr.bf16.mxu0 0
    %1385 = vmatpush1.bf16.msra.mxu0 0
    %1386 = vmatprep.mubr.bf16.mxu0 0
    %1387 = vmatmul.mubr.bf16.gmra.mrb[0].mxu0 %v1352
    %v1388 = vpop.f32.mrb[0].mxu0
    %v1389 = vadd.f32 %v1333, %v1388
    %v1390 = vpop.f32.mrb[0].mxu0
    %v1391 = vpop.f32.mrb[0].mxu0
    %v1392 = vadd.f32 %v1336, %v1391
    %v1393 = vpop.f32.mrb[0].mxu0
    %1394 = vdwg.mxu0
    %v1395 = vld [vmem:[#allocation4 + $0x33] ss:$0 sm:$0xff]
    %v1396 = vadd.f32 %v1389, %v1395
    %v1397 = vadd.f32 %v1392, %v1395
    %v1398 = vadd.f32 %v1396, %v922
    %v1399 = vadd.f32 %v1397, %v923
    %v1400 = vld [vmem:[#allocation4 + $0x34] ss:$0 sm:$0xff]
    %v1401 = vld [vmem:[#allocation4 + $0x35] ss:$0 sm:$0xff]
    %v1402 = vsel %vm97, %v1398, 0.0
    %1403 = vadd.xlane.f32.xlu0 %v1402
    %v1404 = vpop.xlane.xlu0 %1403
    %v1405 = vsel %vm97, %v1399, 0.0
    %1406 = vadd.xlane.f32.xlu0 %v1405
    %v1407 = vpop.xlane.xlu0 %1406
    %v1408 = vmul.f32 %v1404, %v150
    %v1409 = vmul.f32 %v1407, %v150
    %v1410 = vsub.f32 %v1398, %v1408
    %v1411 = vsub.f32 %v1399, %v1409
    %v1412 = vmul.f32 %v1410, %v1410
    %v1413 = vmul.f32 %v1411, %v1411
    %v1414 = vsel %vm97, %v1412, 0.0
    %1415 = vadd.xlane.f32.xlu0 %v1414
    %v1416 = vpop.xlane.xlu0 %1415
    %v1417 = vsel %vm97, %v1413, 0.0
    %1418 = vadd.xlane.f32.xlu0 %v1417
    %v1419 = vpop.xlane.xlu0 %1418
    %v1420 = vmul.f32 %v1416, %v150
    %v1421 = vmul.f32 %v1419, %v150
    %v1422 = vadd.f32 %v1420, 1e-05
    %v1423 = vadd.f32 %v1421, 1e-05
    %v1424 = vrsqrt.pop %v1422
    %v1425 = vrsqrt.pop %v1423
    %v1426 = vmul.f32 %v1410, %v1424
    %v1427 = vmul.f32 %v1411, %v1425
    %v1428 = vmul.f32 %v1426, %v1400
    %v1429 = vmul.f32 %v1427, %v1400
    %v1430 = vadd.f32 %v1428, %v1401
    %v1431 = vadd.f32 %v1429, %v1401
    %v1432 = vld [vmem:[#allocation2 + $0x180] sm:$0xf]
    %v1433 = vld [vmem:[#allocation2 + $0x188] sm:$0xf]
    %v1434 = vld [vmem:[#allocation2 + $0x190] sm:$0xf]
    %v1435 = vld [vmem:[#allocation2 + $0x198] sm:$0xf]
    %v1436 = vld [vmem:[#allocation2 + $0x1a0] sm:$0xf]
    %v1437 = vld [vmem:[#allocation2 + $0x1a8] sm:$0xf]
    %v1438 = vld [vmem:[#allocation2 + $0x1b0] sm:$0xf]
    %v1439 = vld [vmem:[#allocation2 + $0x1b8] sm:$0xf]
    %v1440 = vpack.c.bf16 %v1431, %v1430
    %v1441 = vld [vmem:[#allocation4 + $0x36] ss:$0 sm:$0xff]
    %v1450 = vunpack.c.l.b16 %v1432
    %v1451 = vunpack.c.l.b16 %v1433
    %v1452 = vunpack.c.l.b16 %v1434
    %v1453 = vunpack.c.l.b16 %v1435
    %v1454 = vunpack.c.l.b16 %v1436
    %v1455 = vunpack.c.l.b16 %v1437
    %v1456 = vunpack.c.l.b16 %v1438
    %v1457 = vunpack.c.l.b16 %v1439
    %v1458 = vpack.c.b16 %v1451, %v1450
    %v1459 = vpack.c.b16 %v1453, %v1452
    %v1460 = vpack.c.b16 %v1455, %v1454
    %v1461 = vpack.c.b16 %v1457, %v1456
    %v1467 = vsel %vm97, %v1440, 0
    %1469 = vmatprep.subr.bf16.mxu0 0
    %1470 = vmatpush1.bf16.msra.mxu0 %v1458
    %1471 = vmatprep.subr.bf16.mxu0 0
    %1472 = vmatpush1.bf16.msra.mxu0 %v1459
    %1473 = vmatprep.subr.bf16.mxu0 0
    %1474 = vmatpush1.bf16.msra.mxu0 %v1460
    %1475 = vmatprep.subr.bf16.mxu0 0
    %1476 = vmatpush1.bf16.msra.mxu0 %v1461
    %1477 = vmatprep.subr.bf16.mxu0 0
    %1478 = vmatpush1.bf16.msra.mxu0 0
    %1479 = vmatprep.subr.bf16.mxu0 0
    %1480 = vmatpush1.bf16.msra.mxu0 0
    %1481 = vmatprep.subr.bf16.mxu0 0
    %1482 = vmatpush1.bf16.msra.mxu0 0
    %1483 = vmatprep.subr.bf16.mxu0 0
    %1484 = vmatpush1.bf16.msra.mxu0 0
    %1485 = vmatprep.subr.bf16.mxu0 0
    %1486 = vmatpush1.bf16.msra.mxu0 0
    %1487 = vmatprep.subr.bf16.mxu0 0
    %1488 = vmatpush1.bf16.msra.mxu0 0
    %1489 = vmatprep.subr.bf16.mxu0 0
    %1490 = vmatpush1.bf16.msra.mxu0 0
    %1491 = vmatprep.subr.bf16.mxu0 0
    %1492 = vmatpush1.bf16.msra.mxu0 0
    %1493 = vmatprep.subr.bf16.mxu0 0
    %1494 = vmatpush1.bf16.msra.mxu0 0
    %1495 = vmatprep.subr.bf16.mxu0 0
    %1496 = vmatpush1.bf16.msra.mxu0 0
    %1497 = vmatprep.subr.bf16.mxu0 0
    %1498 = vmatpush1.bf16.msra.mxu0 0
    %1499 = vmatprep.subr.bf16.mxu0 0
    %1500 = vmatpush1.bf16.msra.mxu0 0
    %1501 = vmatprep.mubr.bf16.mxu0 0
    %1502 = vmatmul.mubr.bf16.gmra.mrb[0].mxu0 %v1467
    %v1503 = vpop.f32.mrb[0].mxu0
    %v1504 = vadd.f32 %v1441, %v1503
    %v1505 = vpop.f32.mrb[0].mxu0
    %v1506 = vpop.f32.mrb[0].mxu0
    %v1507 = vadd.f32 %v1441, %v1506
    %v1508 = vpop.f32.mrb[0].mxu0
    %1509 = vdwg.mxu0
    %v1510 = vmul.f32 %v1504, %v1504
    %v1511 = vmul.f32 %v1507, %v1507
    %v1512 = vmul.f32 %v1504, %v1510
    %v1513 = vmul.f32 %v1507, %v1511
    %v1514 = vmul.f32 %v1512, 0.044715
    %v1515 = vmul.f32 %v1513, 0.044715
    %v1516 = vadd.f32 %v1504, %v1514
    %v1517 = vadd.f32 %v1507, %v1515
    %v1518 = vmul.f32 %v1516, 0.7978846
    %v1519 = vmul.f32 %v1517, 0.7978846
    %v1520 = vtanh.pop %v1518
    %v1521 = vtanh.pop %v1519
    %v1522 = vadd.f32 %v1520, 1.0
    %v1523 = vadd.f32 %v1521, 1.0
    %v1524 = vmul.f32 %v1522, 0.5
    %v1525 = vmul.f32 %v1523, 0.5
    %v1526 = vmul.f32 %v1504, %v1524
    %v1527 = vmul.f32 %v1507, %v1525
    %v1528 = vld [vmem:[#allocation2 + $0x240] sm:$0xf]
    %v1529 = vld [vmem:[#allocation2 + $0x248] sm:$0xf]
    %v1530 = vld [vmem:[#allocation2 + $0x250] sm:$0xf]
    %v1531 = vld [vmem:[#allocation2 + $0x258] sm:$0xf]
    %v1532 = vld [vmem:[#allocation2 + $0x260] sm:$0xf]
    %v1533 = vld [vmem:[#allocation2 + $0x268] sm:$0xf]
    %v1534 = vld [vmem:[#allocation2 + $0x270] sm:$0xf]
    %v1535 = vld [vmem:[#allocation2 + $0x278] sm:$0xf]
    %v1536 = vld [vmem:[#allocation2 + $0x280] sm:$0xf]
    %v1537 = vld [vmem:[#allocation2 + $0x288] sm:$0xf]
    %v1538 = vld [vmem:[#allocation2 + $0x290] sm:$0xf]
    %v1539 = vld [vmem:[#allocation2 + $0x298] sm:$0xf]
    %v1540 = vld [vmem:[#allocation2 + $0x2a0] sm:$0xf]
    %v1541 = vld [vmem:[#allocation2 + $0x2a8] sm:$0xf]
    %v1542 = vld [vmem:[#allocation2 + $0x2b0] sm:$0xf]
    %v1543 = vld [vmem:[#allocation2 + $0x2b8] sm:$0xf]
    %v1544 = vpack.c.bf16 %v1527, %v1526
    %v1545 = vld [vmem:[#allocation4 + $0x37] ss:$0 sm:$0xff]
    %v1562 = vunpack.c.l.b16 %v1528
    %v1563 = vunpack.c.l.b16 %v1529
    %v1564 = vunpack.c.l.b16 %v1530
    %v1565 = vunpack.c.l.b16 %v1531
    %v1566 = vunpack.c.l.b16 %v1532
    %v1567 = vunpack.c.l.b16 %v1533
    %v1568 = vunpack.c.l.b16 %v1534
    %v1569 = vunpack.c.l.b16 %v1535
    %v1570 = vunpack.c.l.b16 %v1536
    %v1571 = vunpack.c.l.b16 %v1537
    %v1572 = vunpack.c.l.b16 %v1538
    %v1573 = vunpack.c.l.b16 %v1539
    %v1574 = vunpack.c.l.b16 %v1540
    %v1575 = vunpack.c.l.b16 %v1541
    %v1576 = vunpack.c.l.b16 %v1542
    %v1577 = vunpack.c.l.b16 %v1543
    %v1578 = vpack.c.b16 %v1563, %v1562
    %v1579 = vpack.c.b16 %v1565, %v1564
    %v1580 = vpack.c.b16 %v1567, %v1566
    %v1581 = vpack.c.b16 %v1569, %v1568
    %v1582 = vpack.c.b16 %v1571, %v1570
    %v1583 = vpack.c.b16 %v1573, %v1572
    %v1584 = vpack.c.b16 %v1575, %v1574
    %v1585 = vpack.c.b16 %v1577, %v1576
    %1594 = vmatprep.subr.bf16.mxu0 0
    %1595 = vmatpush1.bf16.msra.mxu0 %v1578
    %1596 = vmatprep.subr.bf16.mxu0 0
    %1597 = vmatpush1.bf16.msra.mxu0 %v1579
    %1598 = vmatprep.subr.bf16.mxu0 0
    %1599 = vmatpush1.bf16.msra.mxu0 %v1580
    %1600 = vmatprep.subr.bf16.mxu0 0
    %1601 = vmatpush1.bf16.msra.mxu0 %v1581
    %1602 = vmatprep.subr.bf16.mxu0 0
    %1603 = vmatpush1.bf16.msra.mxu0 %v1582
    %1604 = vmatprep.subr.bf16.mxu0 0
    %1605 = vmatpush1.bf16.msra.mxu0 %v1583
    %1606 = vmatprep.subr.bf16.mxu0 0
    %1607 = vmatpush1.bf16.msra.mxu0 %v1584
    %1608 = vmatprep.subr.bf16.mxu0 0
    %1609 = vmatpush1.bf16.msra.mxu0 %v1585
    %1610 = vmatprep.subr.bf16.mxu0 0
    %1611 = vmatpush1.bf16.msra.mxu0 0
    %1612 = vmatprep.subr.bf16.mxu0 0
    %1613 = vmatpush1.bf16.msra.mxu0 0
    %1614 = vmatprep.subr.bf16.mxu0 0
    %1615 = vmatpush1.bf16.msra.mxu0 0
    %1616 = vmatprep.subr.bf16.mxu0 0
    %1617 = vmatpush1.bf16.msra.mxu0 0
    %1618 = vmatprep.subr.bf16.mxu0 0
    %1619 = vmatpush1.bf16.msra.mxu0 0
    %1620 = vmatprep.subr.bf16.mxu0 0
    %1621 = vmatpush1.bf16.msra.mxu0 0
    %1622 = vmatprep.subr.bf16.mxu0 0
    %1623 = vmatpush1.bf16.msra.mxu0 0
    %1624 = vmatprep.subr.bf16.mxu0 0
    %1625 = vmatpush1.bf16.msra.mxu0 0
    %1626 = vmatprep.mubr.bf16.mxu0 0
    %1627 = vmatmul.mubr.bf16.gmra.mrb[0].mxu0 %v1544
    %v1628 = vpop.f32.mrb[0].mxu0
    %v1629 = vadd.f32 %v1545, %v1628
    %v1630 = vpop.f32.mrb[0].mxu0
    %v1631 = vpop.f32.mrb[0].mxu0
    %v1632 = vadd.f32 %v1545, %v1631
    %v1633 = vpop.f32.mrb[0].mxu0
    %1634 = vdwg.mxu0
    %v1635 = vadd.f32 %v1629, %v1430
    %v1636 = vadd.f32 %v1632, %v1431
    %v1637 = vld [vmem:[#allocation4 + $0x40] ss:$0 sm:$0xff]
    %v1638 = vld [vmem:[#allocation4 + $0x41] ss:$0 sm:$0xff]
    %v1639 = vsel %vm97, %v1635, 0.0
    %1640 = vadd.xlane.f32.xlu0 %v1639
    %v1641 = vpop.xlane.xlu0 %1640
    %v1642 = vsel %vm97, %v1636, 0.0
    %1643 = vadd.xlane.f32.xlu0 %v1642
    %v1644 = vpop.xlane.xlu0 %1643
    %v1645 = vmul.f32 %v1641, %v150
    %v1646 = vmul.f32 %v1644, %v150
    %v1647 = vsub.f32 %v1635, %v1645
    %v1648 = vsub.f32 %v1636, %v1646
    %v1649 = vmul.f32 %v1647, %v1647
    %v1650 = vmul.f32 %v1648, %v1648
    %v1651 = vsel %vm97, %v1649, 0.0
    %1652 = vadd.xlane.f32.xlu0 %v1651
    %v1653 = vpop.xlane.xlu0 %1652
    %v1654 = vsel %vm97, %v1650, 0.0
    %1655 = vadd.xlane.f32.xlu0 %v1654
    %v1656 = vpop.xlane.xlu0 %1655
    %v1657 = vmul.f32 %v1653, %v150
    %v1658 = vmul.f32 %v1656, %v150
    %v1659 = vadd.f32 %v1657, 1e-05
    %v1660 = vadd.f32 %v1658, 1e-05
    %v1661 = vrsqrt.pop %v1659
    %v1662 = vrsqrt.pop %v1660
    %v1663 = vmul.f32 %v1647, %v1661
    %v1664 = vmul.f32 %v1648, %v1662
    %v1665 = vmul.f32 %v1663, %v1637
    %v1666 = vmul.f32 %v1664, %v1637
    %v1667 = vadd.f32 %v1665, %v1638
    %v1668 = vadd.f32 %v1666, %v1638
    %v1669 = vld [vmem:[#allocation2 + $0x2c0] sm:$0xff]
    %v1670 = vld [vmem:[#allocation2 + $0x2c8] sm:$0xff]
    %v1671 = vld [vmem:[#allocation2 + $0x2d0] sm:$0xff]
    %v1672 = vld [vmem:[#allocation2 + $0x2d8] sm:$0xff]
    %v1673 = vld [vmem:[#allocation2 + $0x2e0] sm:$0xff]
    %v1674 = vld [vmem:[#allocation2 + $0x2e8] sm:$0xff]
    %v1675 = vld [vmem:[#allocation2 + $0x2f0] sm:$0xff]
    %v1676 = vld [vmem:[#allocation2 + $0x2f8] sm:$0xff]
    %v1677 = vpack.c.bf16 %v1668, %v1667
    %s1678 = scalar_lea.vmem [#allocation4], 66
    %v1679 = vld [vmem:[%s1678] ss:$8 sm:$0x3]
    %v1681 = vlaneseq
    %v1682 = vshrl.u32 %v1681, 7
    %v1683 = vsub.s32 0, %v1682
    %v1684 = vrot.slane %v1679, %v1683
    %v1685 = vlaneseq
    %v1686 = vshrl.u32 %v1685, 7
    %v1687 = vsub.s32 1, %v1686
    %v1688 = vrot.slane %v1679, %v1687
    %v1699 = vunpack.c.l.b16 %v1669
    %v1700 = vunpack.c.h.b16 %v1669
    %v1701 = vunpack.c.l.b16 %v1670
    %v1702 = vunpack.c.h.b16 %v1670
    %v1703 = vunpack.c.l.b16 %v1671
    %v1704 = vunpack.c.h.b16 %v1671
    %v1705 = vunpack.c.l.b16 %v1672
    %v1706 = vunpack.c.h.b16 %v1672
    %v1707 = vunpack.c.l.b16 %v1673
    %v1708 = vunpack.c.h.b16 %v1673
    %v1709 = vunpack.c.l.b16 %v1674
    %v1710 = vunpack.c.h.b16 %v1674
    %v1711 = vunpack.c.l.b16 %v1675
    %v1712 = vunpack.c.h.b16 %v1675
    %v1713 = vunpack.c.l.b16 %v1676
    %v1714 = vunpack.c.h.b16 %v1676
    %v1715 = vpack.c.b16 %v1701, %v1699
    %v1716 = vpack.c.b16 %v1702, %v1700
    %v1717 = vpack.c.b16 %v1705, %v1703
    %v1718 = vpack.c.b16 %v1706, %v1704
    %v1719 = vpack.c.b16 %v1709, %v1707
    %v1720 = vpack.c.b16 %v1710, %v1708
    %v1721 = vpack.c.b16 %v1713, %v1711
    %v1722 = vpack.c.b16 %v1714, %v1712
    %v1732 = vsel %vm97, %v1677, 0
    %1734 = vmatprep.subr.bf16.mxu0 %v1716
    %1735 = vmatpush1.bf16.msra.mxu0 %v1715
    %1736 = vmatprep.subr.bf16.mxu0 %v1718
    %1737 = vmatpush1.bf16.msra.mxu0 %v1717
    %1738 = vmatprep.subr.bf16.mxu0 %v1720
    %1739 = vmatpush1.bf16.msra.mxu0 %v1719
    %1740 = vmatprep.subr.bf16.mxu0 %v1722
    %1741 = vmatpush1.bf16.msra.mxu0 %v1721
    %1742 = vmatprep.subr.bf16.mxu0 0
    %1743 = vmatpush1.bf16.msra.mxu0 0
    %1744 = vmatprep.subr.bf16.mxu0 0
    %1745 = vmatpush1.bf16.msra.mxu0 0
    %1746 = vmatprep.subr.bf16.mxu0 0
    %1747 = vmatpush1.bf16.msra.mxu0 0
    %1748 = vmatprep.subr.bf16.mxu0 0
    %1749 = vmatpush1.bf16.msra.mxu0 0
    %1750 = vmatprep.subr.bf16.mxu0 0
    %1751 = vmatpush1.bf16.msra.mxu0 0
    %1752 = vmatprep.subr.bf16.mxu0 0
    %1753 = vmatpush1.bf16.msra.mxu0 0
    %1754 = vmatprep.subr.bf16.mxu0 0
    %1755 = vmatpush1.bf16.msra.mxu0 0
    %1756 = vmatprep.subr.bf16.mxu0 0
    %1757 = vmatpush1.bf16.msra.mxu0 0
    %1758 = vmatprep.subr.bf16.mxu0 0
    %1759 = vmatpush1.bf16.msra.mxu0 0
    %1760 = vmatprep.subr.bf16.mxu0 0
    %1761 = vmatpush1.bf16.msra.mxu0 0
    %1762 = vmatprep.subr.bf16.mxu0 0
    %1763 = vmatpush1.bf16.msra.mxu0 0
    %1764 = vmatprep.subr.bf16.mxu0 0
    %1765 = vmatpush1.bf16.msra.mxu0 0
    %1766 = vmatprep.mubr.bf16.mxu0 0
    %1767 = vmatmul.mubr.bf16.gmra.mrb[0].mxu0 %v1732
    %v1768 = vpop.f32.mrb[0].mxu0
    %v1769 = vadd.f32 %v1684, %v1768
    %v1770 = vpop.f32.mrb[0].mxu0
    %v1771 = vadd.f32 %v1688, %v1770
    %v1772 = vpop.f32.mrb[0].mxu0
    %v1773 = vadd.f32 %v1684, %v1772
    %v1774 = vpop.f32.mrb[0].mxu0
    %v1775 = vadd.f32 %v1688, %v1774
    %1776 = vdwg.mxu0
    %v1777 = vmax.f32 %v1769, 0.0
    %v1778 = vmax.f32 %v1771, 0.0
    %v1779 = vmax.f32 %v1773, 0.0
    %v1780 = vmax.f32 %v1775, 0.0
    %v1781 = vld [vmem:[#allocation2 + $0x300] sm:$0xf]
    %v1782 = vld [vmem:[#allocation2 + $0x308] sm:$0xf]
    %v1783 = vld [vmem:[#allocation2 + $0x310] sm:$0xf]
    %v1784 = vld [vmem:[#allocation2 + $0x318] sm:$0xf]
    %v1785 = vld [vmem:[#allocation2 + $0x320] sm:$0xf]
    %v1786 = vld [vmem:[#allocation2 + $0x328] sm:$0xf]
    %v1787 = vld [vmem:[#allocation2 + $0x330] sm:$0xf]
    %v1788 = vld [vmem:[#allocation2 + $0x338] sm:$0xf]
    %v1789 = vld [vmem:[#allocation2 + $0x340] sm:$0xf]
    %v1790 = vld [vmem:[#allocation2 + $0x348] sm:$0xf]
    %v1791 = vld [vmem:[#allocation2 + $0x350] sm:$0xf]
    %v1792 = vld [vmem:[#allocation2 + $0x358] sm:$0xf]
    %v1793 = vld [vmem:[#allocation2 + $0x360] sm:$0xf]
    %v1794 = vld [vmem:[#allocation2 + $0x368] sm:$0xf]
    %v1795 = vld [vmem:[#allocation2 + $0x370] sm:$0xf]
    %v1796 = vld [vmem:[#allocation2 + $0x378] sm:$0xf]
    %v1797 = vld [vmem:[#allocation2 + $0x380] sm:$0xf]
    %v1798 = vld [vmem:[#allocation2 + $0x388] sm:$0xf]
    %v1799 = vld [vmem:[#allocation2 + $0x390] sm:$0xf]
    %v1800 = vld [vmem:[#allocation2 + $0x398] sm:$0xf]
    %v1801 = vld [vmem:[#allocation2 + $0x3a0] sm:$0xf]
    %v1802 = vld [vmem:[#allocation2 + $0x3a8] sm:$0xf]
    %v1803 = vld [vmem:[#allocation2 + $0x3b0] sm:$0xf]
    %v1804 = vld [vmem:[#allocation2 + $0x3b8] sm:$0xf]
    %v1805 = vld [vmem:[#allocation2 + $0x3c0] sm:$0xf]
    %v1806 = vld [vmem:[#allocation2 + $0x3c8] sm:$0xf]
    %v1807 = vld [vmem:[#allocation2 + $0x3d0] sm:$0xf]
    %v1808 = vld [vmem:[#allocation2 + $0x3d8] sm:$0xf]
    %v1809 = vld [vmem:[#allocation2 + $0x3e0] sm:$0xf]
    %v1810 = vld [vmem:[#allocation2 + $0x3e8] sm:$0xf]
    %v1811 = vld [vmem:[#allocation2 + $0x3f0] sm:$0xf]
    %v1812 = vld [vmem:[#allocation2 + $0x3f8] sm:$0xf]
    %v1813 = vpack.c.bf16 %v1779, %v1777
    %v1814 = vpack.c.bf16 %v1780, %v1778
    %v1815 = vld [vmem:[#allocation4 + $0x43] ss:$0 sm:$0xff]
    %v1848 = vunpack.c.l.b16 %v1781
    %v1849 = vunpack.c.l.b16 %v1782
    %v1850 = vunpack.c.l.b16 %v1783
    %v1851 = vunpack.c.l.b16 %v1784
    %v1852 = vunpack.c.l.b16 %v1785
    %v1853 = vunpack.c.l.b16 %v1786
    %v1854 = vunpack.c.l.b16 %v1787
    %v1855 = vunpack.c.l.b16 %v1788
    %v1856 = vunpack.c.l.b16 %v1789
    %v1857 = vunpack.c.l.b16 %v1790
    %v1858 = vunpack.c.l.b16 %v1791
    %v1859 = vunpack.c.l.b16 %v1792
    %v1860 = vunpack.c.l.b16 %v1793
    %v1861 = vunpack.c.l.b16 %v1794
    %v1862 = vunpack.c.l.b16 %v1795
    %v1863 = vunpack.c.l.b16 %v1796
    %v1864 = vunpack.c.l.b16 %v1797
    %v1865 = vunpack.c.l.b16 %v1798
    %v1866 = vunpack.c.l.b16 %v1799
    %v1867 = vunpack.c.l.b16 %v1800
    %v1868 = vunpack.c.l.b16 %v1801
    %v1869 = vunpack.c.l.b16 %v1802
    %v1870 = vunpack.c.l.b16 %v1803
    %v1871 = vunpack.c.l.b16 %v1804
    %v1872 = vunpack.c.l.b16 %v1805
    %v1873 = vunpack.c.l.b16 %v1806
    %v1874 = vunpack.c.l.b16 %v1807
    %v1875 = vunpack.c.l.b16 %v1808
    %v1876 = vunpack.c.l.b16 %v1809
    %v1877 = vunpack.c.l.b16 %v1810
    %v1878 = vunpack.c.l.b16 %v1811
    %v1879 = vunpack.c.l.b16 %v1812
    %v1880 = vpack.c.b16 %v1849, %v1848
    %v1881 = vpack.c.b16 %v1851, %v1850
    %v1882 = vpack.c.b16 %v1853, %v1852
    %v1883 = vpack.c.b16 %v1855, %v1854
    %v1884 = vpack.c.b16 %v1857, %v1856
    %v1885 = vpack.c.b16 %v1859, %v1858
    %v1886 = vpack.c.b16 %v1861, %v1860
    %v1887 = vpack.c.b16 %v1863, %v1862
    %v1888 = vpack.c.b16 %v1865, %v1864
    %v1889 = vpack.c.b16 %v1867, %v1866
    %v1890 = vpack.c.b16 %v1869, %v1868
    %v1891 = vpack.c.b16 %v1871, %v1870
    %v1892 = vpack.c.b16 %v1873, %v1872
    %v1893 = vpack.c.b16 %v1875, %v1874
    %v1894 = vpack.c.b16 %v1877, %v1876
    %v1895 = vpack.c.b16 %v1879, %v1878
    %1912 = vmatprep.subr.bf16.mxu0 0
    %1913 = vmatpush1.bf16.msra.mxu0 %v1880
    %1914 = vmatprep.subr.bf16.mxu0 0
    %1915 = vmatpush1.bf16.msra.mxu0 %v1881
    %1916 = vmatprep.subr.bf16.mxu0 0
    %1917 = vmatpush1.bf16.msra.mxu0 %v1882
    %1918 = vmatprep.subr.bf16.mxu0 0
    %1919 = vmatpush1.bf16.msra.mxu0 %v1883
    %1920 = vmatprep.subr.bf16.mxu0 0
    %1921 = vmatpush1.bf16.msra.mxu0 %v1884
    %1922 = vmatprep.subr.bf16.mxu0 0
    %1923 = vmatpush1.bf16.msra.mxu0 %v1885
    %1924 = vmatprep.subr.bf16.mxu0 0
    %1925 = vmatpush1.bf16.msra.mxu0 %v1886
    %1926 = vmatprep.subr.bf16.mxu0 0
    %1927 = vmatpush1.bf16.msra.mxu0 %v1887
    %1928 = vmatprep.subr.bf16.mxu0 0
    %1929 = vmatpush1.bf16.msra.mxu0 %v1888
    %1930 = vmatprep.subr.bf16.mxu0 0
    %1931 = vmatpush1.bf16.msra.mxu0 %v1889
    %1932 = vmatprep.subr.bf16.mxu0 0
    %1933 = vmatpush1.bf16.msra.mxu0 %v1890
    %1934 = vmatprep.subr.bf16.mxu0 0
    %1935 = vmatpush1.bf16.msra.mxu0 %v1891
    %1936 = vmatprep.subr.bf16.mxu0 0
    %1937 = vmatpush1.bf16.msra.mxu0 %v1892
    %1938 = vmatprep.subr.bf16.mxu0 0
    %1939 = vmatpush1.bf16.msra.mxu0 %v1893
    %1940 = vmatprep.subr.bf16.mxu0 0
    %1941 = vmatpush1.bf16.msra.mxu0 %v1894
    %1942 = vmatprep.subr.bf16.mxu0 0
    %1943 = vmatpush1.bf16.msra.mxu0 %v1895
    %1944 = vmatprep.mubr.bf16.mxu0 %v1814
    %1945 = vmatmul.mubr.bf16.gmra.mrb[0].mxu0 %v1813
    %v1946 = vpop.f32.mrb[0].mxu0
    %v1947 = vadd.f32 %v1815, %v1946
    %v1948 = vpop.f32.mrb[0].mxu0
    %v1949 = vpop.f32.mrb[0].mxu0
    %v1950 = vadd.f32 %v1815, %v1949
    %v1951 = vpop.f32.mrb[0].mxu0
    %1952 = vdwg.mxu0
    %v1953 = vmax.f32 %v1947, 0.0
    %v1954 = vmax.f32 %v1950, 0.0
    %v1955 = vld [vmem:[#allocation2 + $0x400] sm:$0xf]
    %v1956 = vld [vmem:[#allocation2 + $0x408] sm:$0xf]
    %v1957 = vld [vmem:[#allocation2 + $0x410] sm:$0xf]
    %v1958 = vld [vmem:[#allocation2 + $0x418] sm:$0xf]
    %v1959 = vpack.c.bf16 %v1954, %v1953
    %v1960 = vld [vmem:[#allocation4 + $0x44] ss:$0 sm:$0xff]
    %v1965 = vunpack.c.l.b16 %v1955
    %v1966 = vunpack.c.l.b16 %v1956
    %v1967 = vunpack.c.l.b16 %v1957
    %v1968 = vunpack.c.l.b16 %v1958
    %v1969 = vpack.c.b16 %v1966, %v1965
    %v1970 = vpack.c.b16 %v1968, %v1967
    %v1974 = vsel %vm289, %v1959, 0
    %1976 = vmatprep.subr.bf16.mxu0 0
    %1977 = vmatpush1.bf16.msra.mxu0 %v1969
    %1978 = vmatprep.subr.bf16.mxu0 0
    %1979 = vmatpush1.bf16.msra.mxu0 %v1970
    %1980 = vmatprep.subr.bf16.mxu0 0
    %1981 = vmatpush1.bf16.msra.mxu0 0
    %1982 = vmatprep.subr.bf16.mxu0 0
    %1983 = vmatpush1.bf16.msra.mxu0 0
    %1984 = vmatprep.subr.bf16.mxu0 0
    %1985 = vmatpush1.bf16.msra.mxu0 0
    %1986 = vmatprep.subr.bf16.mxu0 0
    %1987 = vmatpush1.bf16.msra.mxu0 0
    %1988 = vmatprep.subr.bf16.mxu0 0
    %1989 = vmatpush1.bf16.msra.mxu0 0
    %1990 = vmatprep.subr.bf16.mxu0 0
    %1991 = vmatpush1.bf16.msra.mxu0 0
    %1992 = vmatprep.subr.bf16.mxu0 0
    %1993 = vmatpush1.bf16.msra.mxu0 0
    %1994 = vmatprep.subr.bf16.mxu0 0
    %1995 = vmatpush1.bf16.msra.mxu0 0
    %1996 = vmatprep.subr.bf16.mxu0 0
    %1997 = vmatpush1.bf16.msra.mxu0 0
    %1998 = vmatprep.subr.bf16.mxu0 0
    %1999 = vmatpush1.bf16.msra.mxu0 0
    %2000 = vmatprep.subr.bf16.mxu0 0
    %2001 = vmatpush1.bf16.msra.mxu0 0
    %2002 = vmatprep.subr.bf16.mxu0 0
    %2003 = vmatpush1.bf16.msra.mxu0 0
    %2004 = vmatprep.subr.bf16.mxu0 0
    %2005 = vmatpush1.bf16.msra.mxu0 0
    %2006 = vmatprep.subr.bf16.mxu0 0
    %2007 = vmatpush1.bf16.msra.mxu0 0
    %2008 = vmatprep.mubr.bf16.mxu0 0
    %2009 = vmatmul.mubr.bf16.gmra.mrb[0].mxu0 %v1974
    %v2010 = vpop.f32.mrb[0].mxu0
    %v2011 = vadd.f32 %v1960, %v2010
    %v2012 = vpop.f32.mrb[0].mxu0
    %v2013 = vpop.f32.mrb[0].mxu0
    %v2014 = vadd.f32 %v1960, %v2013
    %v2015 = vpop.f32.mrb[0].mxu0
    %2016 = vdwg.mxu0
    %vm2017 = vcmp.lt.s32.totalorder %v49, 4
    %v2018 = vsel %vm2017, %v2011, -inf
    %v2019 = vsel %vm2017, %v2014, -inf
    %2020 = vmax.xlane.f32.xlu0 %v2018
    %v2021 = vpop.xlane.xlu0 %2020
    %2022 = vmax.xlane.f32.xlu0 %v2019
    %v2023 = vpop.xlane.xlu0 %2022
    %v2024 = vsub.f32 %v2018, %v2021
    %v2025 = vsub.f32 %v2019, %v2023
    %v2026 = vmul.f32 %v2024, 1.442695
    %v2027 = vpow.pop %v2026
    %v2028 = vmul.f32 %v2025, 1.442695
    %v2029 = vpow.pop %v2028
    %2030 = vadd.xlane.f32.xlu0 %v2027
    %v2031 = vpop.xlane.xlu0 %2030
    %2032 = vadd.xlane.f32.xlu0 %v2029
    %v2033 = vpop.xlane.xlu0 %2032
    %v2034 = vlog2.pop %v2031
    %v2035 = vmul.f32 %v2034, 0.6931472
    %v2036 = vlog2.pop %v2033
    %v2037 = vmul.f32 %v2036, 0.6931472
    %v2038 = vsub.f32 %v2024, %v2035
    %v2039 = vsub.f32 %v2025, %v2037
    %2040 = vst [vmem:[%s4] sm:$0xff] %v2038
    %2041 = vst [vmem:[%s4 + $0x8] sm:$0xff] %v2039
    // Predicated region
    $region26: #{bert_forward.1} parent=1 // pred_check
      _
    $region27: #{bert_forward.1} parent=1 // pred_check_branch
      %2043 = sbr.rel (0) target = $region29
    $region28: #{bert_forward.1} parent=1 // pred_region
      _
    $region29: #{bert_forward.1} parent=1 // pred_fallthru
      _
    // Predicated region
    $region30: #{bert_forward.1} parent=1 // pred_check
      _
    $region31: #{bert_forward.1} parent=1 // pred_check_branch
      %2045 = sbr.rel (0) target = $region33
    $region32: #{bert_forward.1} parent=1 // pred_region
      _
    $region33: #{bert_forward.1} parent=1 // pred_fallthru
      _
    %2046 = vsyncpa [#allocation3], 1
    %2047 = vsyncpa [#allocation5], 1

</llo_original>
